<compile_context>
chip_gen: v7x
topology: tpu7x:2x2x1
jax: 0.10.0
libtpu: 0.0.40
codegen_flags: <defaults>
</compile_context>

<pallas_src>
import jax
import jax.numpy as jnp
from jax import lax
from jax.experimental import pallas as pl
from jax.experimental.pallas import tpu as pltpu


# ---------------------------------------------------------------------------
# Parameter packing (done ONCE at init / parameter-update time, not per call).
# Slab layout (f32):
#   rows [0, out_dim)            cols [0, in_dim)  : w1   (out_dim, in_dim)
#   rows [out_dim, 2*out_dim)    cols [0, out_dim) : w2   (out_dim, out_dim)
#   row   2*out_dim              cols [0, out_dim) : b1
#   row   2*out_dim + 1          cols [0, out_dim) : b2
# ---------------------------------------------------------------------------
def pack_params(w1, b1, w2, b2):
    w1 = jnp.asarray(w1, jnp.float32)
    w2 = jnp.asarray(w2, jnp.float32)
    b1 = jnp.asarray(b1, jnp.float32)
    b2 = jnp.asarray(b2, jnp.float32)
    out_dim, in_dim = w1.shape
    cols = max(in_dim, out_dim)
    slab = jnp.zeros((2 * out_dim + 2, cols), jnp.float32)
    slab = slab.at[0:out_dim, 0:in_dim].set(w1)
    slab = slab.at[out_dim:2 * out_dim, 0:out_dim].set(w2)
    slab = slab.at[2 * out_dim, 0:out_dim].set(b1)
    slab = slab.at[2 * out_dim + 1, 0:out_dim].set(b2)
    return slab


# ---------------------------------------------------------------------------
# Kernel: one grid step processes a block of `bb` independent instances.
# ---------------------------------------------------------------------------
def last_embedding_kernel(xcat_ref, params_ref, x_out_ref, loss_ref):
    xcat = xcat_ref[...]                                  # (bb, n, in_dim) f32
    bb, n, in_dim = xcat.shape
    out_dim = x_out_ref.shape[-1]

    params = params_ref[...]                              # (2*out_dim+2, cols)
    w1 = params[0:out_dim, 0:in_dim]                      # (out_dim, in_dim)
    w2 = params[out_dim:2 * out_dim, 0:out_dim]           # (out_dim, out_dim)
    b1 = params[2 * out_dim:2 * out_dim + 1, 0:out_dim]   # (1, out_dim)
    b2 = params[2 * out_dim + 1:2 * out_dim + 2, 0:out_dim]

    # ---- embed_layer1 -> tanh -> embed_layer ----
    # Weights are in PyTorch (out, in) layout; the "transpose" is just the
    # einsum contraction pattern (free on the MXU).
    h = jnp.tanh(jnp.einsum("bnf,of->bno", xcat, w1,
                            preferred_element_type=jnp.float32) + b1)
    x = jnp.einsum("bnh,oh->bno", h, w2,
                   preferred_element_type=jnp.float32) + b2      # (bb, n, out_dim)
    x_out_ref[...] = x.astype(x_out_ref.dtype)

    # ---- distance_loss(X, X_cat), per instance ----
    ii = lax.broadcasted_iota(jnp.int32, (bb, n, n), 1)
    jj = lax.broadcasted_iota(jnp.int32, (bb, n, n), 2)
    eye = ii == jj                                        # shared by d1 / d2

    def pairwise_sqdist(a):
        # rows of a: (bb, n, f) -> squared pairwise distances (bb, n, n),
        # diagonal exactly zero (matches torch.cdist(a, a) ** 2).
        g = jnp.einsum("bif,bjf->bij", a, a,
                       preferred_element_type=jnp.float32)        # Gram
        gd = jnp.where(eye, g, 0.0)                       # keep diag = ||x_i||^2
        rowsq = jnp.sum(gd, axis=2, keepdims=True)        # (bb, n, 1) lane reduce
        colsq = jnp.sum(gd, axis=1, keepdims=True)        # (bb, 1, n) sublane reduce
        return jnp.maximum(rowsq + colsq - 2.0 * g, 0.0)  # clamp tiny negatives

    d1 = pairwise_sqdist(x)                               # cdist(X, X)**2
    d2 = pairwise_sqdist(xcat)                            # cdist(X_cat, X_cat)**2

    s1 = jnp.sum(jnp.sum(d1, axis=2, keepdims=True), axis=1, keepdims=True)  # (bb,1,1)
    s2 = jnp.sum(jnp.sum(d2, axis=2, keepdims=True), axis=1, keepdims=True)  # (bb,1,1)

    # Divide-first formulation (tiny (bb,1,1) reciprocals, no overflow risk,
    # no approx-recip/Newton chain on the epilogue critical path).
    diff = d1 * (1.0 / s1) - d2 * (1.0 / s2)
    fro2 = jnp.sum(jnp.sum(diff * diff, axis=2, keepdims=True),
                   axis=1, keepdims=True)                 # (bb, 1, 1)

    scale = jnp.float32(float(n) * float(n))              # numel(D1)
    loss_ref[...] = (jnp.sqrt(fro2) * scale).reshape(bb, 1)


# ---------------------------------------------------------------------------
# Wrappers.  The hot path only passes (x_cat, params_slab) — no per-call glue.
# ---------------------------------------------------------------------------
def last_embedding_forward_batched(x_cat, params, *, block_b=None):
    """x_cat: (B, N, m*E) f32.  params: pre-packed slab from pack_params()."""
    B, N, in_dim = x_cat.shape
    out_dim = (params.shape[0] - 2) // 2
    if block_b is None:
        block_b = B
    assert B % block_b == 0, "B must be divisible by block_b"
    assert block_b == B or block_b % 8 == 0, "block_b must be 8-aligned (or == B)"
    grid = (B // block_b,)

    x_out, loss = pl.pallas_call(
        last_embedding_kernel,
        out_shape=(
            jax.ShapeDtypeStruct((B, N, out_dim), jnp.float32),
            jax.ShapeDtypeStruct((B, 1), jnp.float32),
        ),
        grid=grid,
        in_specs=[
            pl.BlockSpec((block_b, N, in_dim), lambda i: (i, 0, 0)),
            # Constant block index -> param slab DMA'd once, VMEM-resident
            # across all grid steps.
            pl.BlockSpec(params.shape, lambda i: (0, 0)),
        ],
        out_specs=(
            pl.BlockSpec((block_b, N, out_dim), lambda i: (i, 0, 0)),
            pl.BlockSpec((block_b, 1), lambda i: (i, 0)),
        ),
        compiler_params=pltpu.CompilerParams(
            dimension_semantics=("parallel",)),   # shards batch across v7x's 2 TCs
    )(x_cat, params)
    return loss[:, 0], x_out


def last_embedding_forward(x_cat, params):
    """Single-instance API matching the PyTorch module: x_cat (N, m*E)."""
    loss, x_out = last_embedding_forward_batched(x_cat[None], params)
    return loss[0], x_out[0]


# ---------------------------------------------------------------------------
# Plain-JAX reference mirroring the PyTorch module exactly.
# ---------------------------------------------------------------------------
def _reference_single(x_cat, w1, b1, w2, b2):
    x = jnp.tanh(x_cat @ w1.T + b1)
    x = x @ w2.T + b2

    def sqd(a):
        return jnp.sum((a[:, None, :] - a[None, :, :]) ** 2, axis=-1)

    d1 = sqd(x); d1 = d1 / d1.sum()
    d2 = sqd(x_cat); d2 = d2 / d2.sum()
    n = d1.size
    return jnp.sqrt(jnp.sum((d1 - d2) ** 2)) * n, x


if __name__ == "__main__":
    m, embed_dim, N = 4, 8, 8                   # small, consistent with the module
    B, block_b = 16, 8                          # 16 instances, 8 per grid step
    in_dim, out_dim = m * embed_dim, 2 * embed_dim

    key = jax.random.PRNGKey(0)
    k_x, k_w1, k_b1, k_w2, k_b2 = jax.random.split(key, 5)

    x_cat = jax.random.normal(k_x, (B, N, in_dim), dtype=jnp.float32)

    # deterministic PyTorch-style Linear init: U(-1/sqrt(fan_in), 1/sqrt(fan_in))
    lim1 = 1.0 / jnp.sqrt(jnp.float32(in_dim))
    lim2 = 1.0 / jnp.sqrt(jnp.float32(out_dim))
    w1 = jax.random.uniform(k_w1, (out_dim, in_dim), jnp.float32, -lim1, lim1)
    b1 = jax.random.uniform(k_b1, (out_dim,), jnp.float32, -lim1, lim1)
    w2 = jax.random.uniform(k_w2, (out_dim, out_dim), jnp.float32, -lim2, lim2)
    b2 = jax.random.uniform(k_b2, (out_dim,), jnp.float32, -lim2, lim2)

    # pack ONCE at init time — not part of the per-call path
    params = pack_params(w1, b1, w2, b2)

    fwd_batched = jax.jit(last_embedding_forward_batched,
                          static_argnames=("block_b",))
    loss, x_out = jax.block_until_ready(fwd_batched(x_cat, params, block_b=block_b))

    # single-instance API (the exact PyTorch-module contract), exercised once
    loss0, x0 = jax.block_until_ready(jax.jit(last_embedding_forward)(x_cat[0], params))

    ref_loss, ref_x = jax.vmap(
        lambda xc: _reference_single(xc, w1, b1, w2, b2))(x_cat)

    assert jnp.allclose(x_out, ref_x, atol=1e-4, rtol=1e-4)
    assert jnp.allclose(loss, ref_loss, atol=1e-4, rtol=1e-4)
    assert jnp.allclose(x0, ref_x[0], atol=1e-4, rtol=1e-4)
    assert jnp.allclose(loss0, ref_loss[0], atol=1e-4, rtol=1e-4)

    print("KERNEL_OK")
</pallas_src>

<mosaic_0001>
module attributes {stable_mosaic.version = 11 : i64} {
  func.func @last_embedding_kernel(%arg0: i32, %arg1: memref<8x8x32xf32, #tpu.memory_space<vmem>>, %arg2: memref<34x32xf32, #tpu.memory_space<vmem>>, %arg3: memref<8x8x16xf32, #tpu.memory_space<vmem>>, %arg4: memref<8x1xf32, #tpu.memory_space<vmem>>) attributes {dimension_semantics = [#tpu.dimension_semantics<parallel>], iteration_bounds = array<i64: 2>, scalar_prefetch = 0 : i64, scratch_operands = 0 : i64, tpu.core_type = #tpu.core_type<tc>, window_params = [{transform_indices = @transform_0, window_bounds = array<i64: 8, 8, 32>}, {pipeline_mode = #tpu.pipeline_mode<synchronous>, transform_indices = @transform_1, window_bounds = array<i64: 34, 32>}, {transform_indices = @transform_2, window_bounds = array<i64: 8, 8, 16>}, {transform_indices = @transform_3, window_bounds = array<i64: 8, 1>}]} {
    %c0 = arith.constant 0 : index
    %c0_0 = arith.constant 0 : index
    %c0_1 = arith.constant 0 : index
    %0 = vector.load %arg1[%c0, %c0_0, %c0_1] : memref<8x8x32xf32, #tpu.memory_space<vmem>>, vector<8x8x32xf32>
    %c0_2 = arith.constant 0 : index
    %c0_3 = arith.constant 0 : index
    %1 = vector.load %arg2[%c0_2, %c0_3] : memref<34x32xf32, #tpu.memory_space<vmem>>, vector<34x32xf32>
    %2 = vector.extract_strided_slice %1 {offsets = [0, 0], sizes = [16, 32], strides = [1, 1]} : vector<34x32xf32> to vector<16x32xf32>
    %3 = vector.extract_strided_slice %1 {offsets = [16, 0], sizes = [16, 16], strides = [1, 1]} : vector<34x32xf32> to vector<16x16xf32>
    %4 = vector.extract_strided_slice %1 {offsets = [32, 0], sizes = [1, 16], strides = [1, 1]} : vector<34x32xf32> to vector<1x16xf32>
    %5 = vector.extract_strided_slice %1 {offsets = [33, 0], sizes = [1, 16], strides = [1, 1]} : vector<34x32xf32> to vector<1x16xf32>
    "tpu.trace_start"() <{level = 10 : i32, message = "bnf,of->bno"}> : () -> ()
    %cst = arith.constant dense<0.000000e+00> : vector<8x8x16xf32>
    %6 = tpu.matmul %0, %2, %cst {dimension_numbers = #tpu.dot_dimension_numbers<[2], [1], [0, 1], [0], [0, 0, 0, 1, 1, 0], [], []>} : vector<8x8x32xf32>, vector<16x32xf32>, vector<8x8x16xf32> -> vector<8x8x16xf32>
    "tpu.trace_stop"() : () -> ()
    %7 = vector.shape_cast %4 : vector<1x16xf32> to vector<1x1x16xf32>
    %8 = vector.broadcast %7 : vector<1x1x16xf32> to vector<8x8x16xf32>
    %9 = arith.addf %6, %8 : vector<8x8x16xf32>
    %10 = math.tanh %9 : vector<8x8x16xf32>
    "tpu.trace_start"() <{level = 10 : i32, message = "bnh,oh->bno"}> : () -> ()
    %cst_4 = arith.constant dense<0.000000e+00> : vector<8x8x16xf32>
    %11 = tpu.matmul %10, %3, %cst_4 {dimension_numbers = #tpu.dot_dimension_numbers<[2], [1], [0, 1], [0], [0, 0, 0, 1, 1, 0], [], []>} : vector<8x8x16xf32>, vector<16x16xf32>, vector<8x8x16xf32> -> vector<8x8x16xf32>
    "tpu.trace_stop"() : () -> ()
    %12 = vector.shape_cast %5 : vector<1x16xf32> to vector<1x1x16xf32>
    %13 = vector.broadcast %12 : vector<1x1x16xf32> to vector<8x8x16xf32>
    %14 = arith.addf %11, %13 : vector<8x8x16xf32>
    %c0_5 = arith.constant 0 : index
    %c0_6 = arith.constant 0 : index
    %c0_7 = arith.constant 0 : index
    %15 = vector.load %arg3[%c0_5, %c0_6, %c0_7] : memref<8x8x16xf32, #tpu.memory_space<vmem>>, vector<8x8x16xf32>
    tpu.vector_store %arg3[%c0_5, %c0_6, %c0_7], %14 {strides = array<i32>} : memref<8x8x16xf32, #tpu.memory_space<vmem>>, vector<8x8x16xf32>,
    %16 = tpu.iota {dimensions = array<i32: 1>} : vector<8x8x8xi32>
    %17 = tpu.iota {dimensions = array<i32: 2>} : vector<8x8x8xi32>
    %18 = arith.cmpi eq, %16, %17 : vector<8x8x8xi32>
    "tpu.trace_start"() <{level = 10 : i32, message = "bif,bjf->bij"}> : () -> ()
    %cst_8 = arith.constant dense<0.000000e+00> : vector<8x8x8xf32>
    %19 = tpu.matmul %14, %14, %cst_8 {dimension_numbers = #tpu.dot_dimension_numbers<[2], [2], [1], [1], [0, 0, 0, 1, 1, 1], [0], [0]>} : vector<8x8x16xf32>, vector<8x8x16xf32>, vector<8x8x8xf32> -> vector<8x8x8xf32>
    %cst_9 = arith.constant 0.000000e+00 : f32
    "tpu.trace_stop"() : () -> ()
    %20 = vector.broadcast %cst_9 : f32 to vector<8x8x8xf32>
    %21 = arith.select %18, %19, %20 : vector<8x8x8xi1>, vector<8x8x8xf32>
    %cst_10 = arith.constant dense<0.000000e+00> : vector<8x8xf32>
    %22 = vector.multi_reduction <add>, %21, %cst_10 [2] : vector<8x8x8xf32> to vector<8x8xf32>
    %23 = vector.shape_cast %22 : vector<8x8xf32> to vector<8x8x1xf32>
    %cst_11 = arith.constant dense<0.000000e+00> : vector<8x8xf32>
    %24 = vector.multi_reduction <add>, %21, %cst_11 [1] : vector<8x8x8xf32> to vector<8x8xf32>
    %25 = vector.shape_cast %24 : vector<8x8xf32> to vector<8x1x8xf32>
    %26 = vector.broadcast %23 : vector<8x8x1xf32> to vector<8x8x8xf32>
    %27 = vector.broadcast %25 : vector<8x1x8xf32> to vector<8x8x8xf32>
    %28 = arith.addf %26, %27 : vector<8x8x8xf32>
    %cst_12 = arith.constant 2.000000e+00 : f32
    %29 = vector.broadcast %cst_12 : f32 to vector<8x8x8xf32>
    %30 = arith.mulf %29, %19 : vector<8x8x8xf32>
    %31 = arith.subf %28, %30 : vector<8x8x8xf32>
    %cst_13 = arith.constant 0.000000e+00 : f32
    %32 = vector.broadcast %cst_13 : f32 to vector<8x8x8xf32>
    %33 = arith.maximumf %31, %32 : vector<8x8x8xf32>
    "tpu.trace_start"() <{level = 10 : i32, message = "bif,bjf->bij"}> : () -> ()
    %cst_14 = arith.constant dense<0.000000e+00> : vector<8x8x8xf32>
    %34 = tpu.matmul %0, %0, %cst_14 {dimension_numbers = #tpu.dot_dimension_numbers<[2], [2], [1], [1], [0, 0, 0, 1, 1, 1], [0], [0]>} : vector<8x8x32xf32>, vector<8x8x32xf32>, vector<8x8x8xf32> -> vector<8x8x8xf32>
    %cst_15 = arith.constant 0.000000e+00 : f32
    "tpu.trace_stop"() : () -> ()
    %35 = vector.broadcast %cst_15 : f32 to vector<8x8x8xf32>
    %36 = arith.select %18, %34, %35 : vector<8x8x8xi1>, vector<8x8x8xf32>
    %cst_16 = arith.constant dense<0.000000e+00> : vector<8x8xf32>
    %37 = vector.multi_reduction <add>, %36, %cst_16 [2] : vector<8x8x8xf32> to vector<8x8xf32>
    %38 = vector.shape_cast %37 : vector<8x8xf32> to vector<8x8x1xf32>
    %cst_17 = arith.constant dense<0.000000e+00> : vector<8x8xf32>
    %39 = vector.multi_reduction <add>, %36, %cst_17 [1] : vector<8x8x8xf32> to vector<8x8xf32>
    %40 = vector.shape_cast %39 : vector<8x8xf32> to vector<8x1x8xf32>
    %41 = vector.broadcast %38 : vector<8x8x1xf32> to vector<8x8x8xf32>
    %42 = vector.broadcast %40 : vector<8x1x8xf32> to vector<8x8x8xf32>
    %43 = arith.addf %41, %42 : vector<8x8x8xf32>
    %cst_18 = arith.constant 2.000000e+00 : f32
    %44 = vector.broadcast %cst_18 : f32 to vector<8x8x8xf32>
    %45 = arith.mulf %44, %34 : vector<8x8x8xf32>
    %46 = arith.subf %43, %45 : vector<8x8x8xf32>
    %cst_19 = arith.constant 0.000000e+00 : f32
    %47 = vector.broadcast %cst_19 : f32 to vector<8x8x8xf32>
    %48 = arith.maximumf %46, %47 : vector<8x8x8xf32>
    %cst_20 = arith.constant dense<0.000000e+00> : vector<8x8xf32>
    %49 = vector.multi_reduction <add>, %33, %cst_20 [2] : vector<8x8x8xf32> to vector<8x8xf32>
    %50 = vector.shape_cast %49 : vector<8x8xf32> to vector<8x8x1xf32>
    %cst_21 = arith.constant dense<0.000000e+00> : vector<8x1xf32>
    %51 = vector.multi_reduction <add>, %50, %cst_21 [1] : vector<8x8x1xf32> to vector<8x1xf32>
    %52 = vector.shape_cast %51 : vector<8x1xf32> to vector<8x1x1xf32>
    %cst_22 = arith.constant dense<0.000000e+00> : vector<8x8xf32>
    %53 = vector.multi_reduction <add>, %48, %cst_22 [2] : vector<8x8x8xf32> to vector<8x8xf32>
    %54 = vector.shape_cast %53 : vector<8x8xf32> to vector<8x8x1xf32>
    %cst_23 = arith.constant dense<0.000000e+00> : vector<8x1xf32>
    %55 = vector.multi_reduction <add>, %54, %cst_23 [1] : vector<8x8x1xf32> to vector<8x1xf32>
    %56 = vector.shape_cast %55 : vector<8x1xf32> to vector<8x1x1xf32>
    %cst_24 = arith.constant 1.000000e+00 : f32
    %57 = vector.broadcast %cst_24 : f32 to vector<8x1x1xf32>
    %58 = arith.divf %57, %52 : vector<8x1x1xf32>
    %59 = vector.broadcast %58 : vector<8x1x1xf32> to vector<8x8x8xf32>
    %60 = arith.mulf %33, %59 : vector<8x8x8xf32>
    %cst_25 = arith.constant 1.000000e+00 : f32
    %61 = vector.broadcast %cst_25 : f32 to vector<8x1x1xf32>
    %62 = arith.divf %61, %56 : vector<8x1x1xf32>
    %63 = vector.broadcast %62 : vector<8x1x1xf32> to vector<8x8x8xf32>
    %64 = arith.mulf %48, %63 : vector<8x8x8xf32>
    %65 = arith.subf %60, %64 : vector<8x8x8xf32>
    %66 = arith.mulf %65, %65 : vector<8x8x8xf32>
    %cst_26 = arith.constant dense<0.000000e+00> : vector<8x8xf32>
    %67 = vector.multi_reduction <add>, %66, %cst_26 [2] : vector<8x8x8xf32> to vector<8x8xf32>
    %68 = vector.shape_cast %67 : vector<8x8xf32> to vector<8x8x1xf32>
    %cst_27 = arith.constant dense<0.000000e+00> : vector<8x1xf32>
    %69 = vector.multi_reduction <add>, %68, %cst_27 [1] : vector<8x8x1xf32> to vector<8x1xf32>
    %70 = vector.shape_cast %69 : vector<8x1xf32> to vector<8x1x1xf32>
    %71 = math.sqrt %70 : vector<8x1x1xf32>
    %cst_28 = arith.constant 6.400000e+01 : f32
    %72 = vector.broadcast %cst_28 : f32 to vector<8x1x1xf32>
    %73 = arith.mulf %71, %72 : vector<8x1x1xf32>
    %74 = vector.shape_cast %73 : vector<8x1x1xf32> to vector<8x1xf32>
    %c0_29 = arith.constant 0 : index
    %c0_30 = arith.constant 0 : index
    %75 = vector.load %arg4[%c0_29, %c0_30] : memref<8x1xf32, #tpu.memory_space<vmem>>, vector<8x1xf32>
    tpu.vector_store %arg4[%c0_29, %c0_30], %74 {strides = array<i32>} : memref<8x1xf32, #tpu.memory_space<vmem>>, vector<8x1xf32>,
    return
  }
  func.func @transform_0(%arg0: i32) -> (i32, i32, i32) {
    %c0_i32 = arith.constant 0 : i32
    %c0_i32_0 = arith.constant 0 : i32
    %c0_i32_1 = arith.constant 0 : i32
    return %arg0, %c0_i32, %c0_i32_0 : i32, i32, i32
  }
  func.func @transform_1(%arg0: i32) -> (i32, i32) {
    %c0_i32 = arith.constant 0 : i32
    %c0_i32_0 = arith.constant 0 : i32
    %c0_i32_1 = arith.constant 0 : i32
    return %c0_i32, %c0_i32_0 : i32, i32
  }
  func.func @transform_2(%arg0: i32) -> (i32, i32, i32) {
    %c0_i32 = arith.constant 0 : i32
    %c0_i32_0 = arith.constant 0 : i32
    %c0_i32_1 = arith.constant 0 : i32
    return %arg0, %c0_i32, %c0_i32_0 : i32, i32, i32
  }
  func.func @transform_3(%arg0: i32) -> (i32, i32) {
    %c0_i32 = arith.constant 0 : i32
    %c0_i32_0 = arith.constant 0 : i32
    return %arg0, %c0_i32 : i32, i32
  }
}

</mosaic_0001>

<llo_original>
// kernel: last_embedding_forward_batched.1
$region0: #{last_embedding_forward_batched.1}
  #allocation0 [shape = 'u32[]', space=smem, size = 0x4, offset = 0x4, fixed_abs, tag = 'smem constant byte address 0x4 - core index']
  #allocation1 [shape = 'u32[144,128]{1,0:T(1,128)}', space=vmem, size = 0x12000, scoped, tag = 'internal scratch']
  %s0 = inlined_call_operand.hbm [shape: f32[16,8,32], index: 0, kind: input, shape index: {}]
  %s1 = inlined_call_operand.vmem [shape: f32[34,32], index: 1, kind: input, shape index: {}]
  %s2 = inlined_call_operand.hbm [shape: f32[16,8,16], index: 2, kind: output, shape index: {0}]
  %s3 = inlined_call_operand.vmem [shape: f32[16,1], index: 3, kind: output, shape index: {1}]
  %4 = xla_tuple %s2, %s3
  %s5 = sld [smem:[#allocation0]]
  $region53: #{last_embedding_forward_batched.1} parent=0
    _
  %s7 = ssub.s32 1, %s5
  %s8 = scalar_select 0, %s7, %s5
  $region1: #{last_embedding_forward_batched.1} parent=0
    #allocation2 [shape = 'u8[65536]{0}', space=vmem, size = 0x10000, scoped, tag = 'input window, operand 0']
    #allocation3 [shape = 's32[2]{0}', space=sflag, size = 0x8, scoped, tag = 'scoped memory for last_embedding_forward_batched.1']
    #allocation4 [shape = 's32[2]{0}', space=sflag, size = 0x8, scoped, tag = 'scoped memory for last_embedding_forward_batched.1']
    #allocation5 [shape = 'u8[65536]{0}', space=vmem, size = 0x10000, scoped, tag = 'output window, operand 0']
    %9 = vsyncpa [#allocation3], 0
    %s10 = scalar_lea.sflag [#allocation3], 1
    %11 = vsyncpa %s10, 0
    %12 = vsyncpa [#allocation4], 0
    %s13 = scalar_lea.sflag [#allocation4], 1
    %14 = vsyncpa %s13, 0
    loop: start=0, step=1, limit=4
    $region2: #{last_embedding_forward_batched.1} parent=1 // loop_pre_header
      _
    $region3: #{last_embedding_forward_batched.1} parent=1 // loop_header
      %s16 = sphi 0, %s20
      %p17 = scmp.ge.s32.totalorder %s16, 4
      %s26 = sphi 0, %s28
      %s29 = sphi 0, %s26
      %s30 = sphi 0, %s29
      %s46 = sphi 0, %s30
      %s50 = sphi 0, %s50
      %s52 = sphi 0, %s50
      %s53 = sphi 0, %s52
      %s67 = sphi 0, %s53
      %s73 = sphi 0, %s75
      %s76 = sphi 0, %s73
      %s77 = sphi 0, %s76
      %s93 = sphi 0, %s77
      %s99 = sphi 0, %s101
      %s102 = sphi 0, %s99
      %s103 = sphi 0, %s102
      %s119 = sphi 0, %s103
    $region4: #{last_embedding_forward_batched.1} parent=1 // loop_header_branch
      %19 = sbr.rel (%p17) target = $region8
    $region5: #{last_embedding_forward_batched.1} parent=1 // loop_body
      %s21 = ssub.s32 %s16, 1
      %s22 = ssub.s32 %s16, 2
      %s23 = sadd.s32 %s16, 1
      %s24 = ssub.s32 %s16, %s23
      %p25 = scmp.eq.s32.totalorder %s24, 0
      %s27 = sadd.s32 %s26, 1
      %s28 = scalar_select %p25, %s26, %s27
      %p31 = pneg %p25
      %p32 = scmp.eq.s32.totalorder %s16, 1
      %p33 = por %p31, %p32
      %p34 = scmp.ne.s32.totalorder %s26, %s29
      %p35 = scmp.eq.s32.totalorder %s16, 0
      %p36 = por %p34, %p35
      %p37 = scmp.ne.s32.totalorder %s26, %s29
      %p38 = scmp.eq.s32.totalorder %s21, 1
      %p39 = por %p37, %p38
      %p40 = scmp.ne.s32.totalorder %s29, %s30
      %p41 = scmp.eq.s32.totalorder %s21, 0
      %p42 = por %p40, %p41
      %p43 = scmp.ne.s32.totalorder %s29, %s30
      %p44 = scmp.eq.s32.totalorder %s22, 1
      %p45 = por %p43, %p44
      %p47 = scmp.ne.s32.totalorder %s30, %s46
      %p48 = scmp.eq.s32.totalorder %s22, 0
      %p49 = por %p47, %p48
      %s51 = sadd.s32 %s50, 1
      %p54 = scmp.eq.s32.totalorder %s16, 1
      %p55 = scmp.ne.s32.totalorder %s50, %s52
      %p56 = scmp.eq.s32.totalorder %s16, 0
      %p57 = por %p55, %p56
      %p58 = scmp.ne.s32.totalorder %s50, %s52
      %p59 = scmp.eq.s32.totalorder %s21, 1
      %p60 = por %p58, %p59
      %p61 = scmp.ne.s32.totalorder %s52, %s53
      %p62 = scmp.eq.s32.totalorder %s21, 0
      %p63 = por %p61, %p62
      %p64 = scmp.ne.s32.totalorder %s52, %s53
      %p65 = scmp.eq.s32.totalorder %s22, 1
      %p66 = por %p64, %p65
      %p68 = scmp.ne.s32.totalorder %s53, %s67
      %p69 = scmp.eq.s32.totalorder %s22, 0
      %p70 = por %p68, %p69
      %s71 = ssub.s32 %s16, %s23
      %p72 = scmp.eq.s32.totalorder %s71, 0
      %s74 = sadd.s32 %s73, 1
      %s75 = scalar_select %p72, %s73, %s74
      %p78 = pneg %p72
      %p79 = scmp.eq.s32.totalorder %s16, 1
      %p80 = por %p78, %p79
      %p81 = scmp.ne.s32.totalorder %s73, %s76
      %p82 = scmp.eq.s32.totalorder %s16, 0
      %p83 = por %p81, %p82
      %p84 = scmp.ne.s32.totalorder %s73, %s76
      %p85 = scmp.eq.s32.totalorder %s21, 1
      %p86 = por %p84, %p85
      %p87 = scmp.ne.s32.totalorder %s76, %s77
      %p88 = scmp.eq.s32.totalorder %s21, 0
      %p89 = por %p87, %p88
      %p90 = scmp.ne.s32.totalorder %s76, %s77
      %p91 = scmp.eq.s32.totalorder %s22, 1
      %p92 = por %p90, %p91
      %p94 = scmp.ne.s32.totalorder %s77, %s93
      %p95 = scmp.eq.s32.totalorder %s22, 0
      %p96 = por %p94, %p95
      %s97 = ssub.s32 %s16, %s23
      %p98 = scmp.eq.s32.totalorder %s97, 0
      %s100 = sadd.s32 %s99, 1
      %s101 = scalar_select %p98, %s99, %s100
      %p104 = pneg %p98
      %p105 = scmp.eq.s32.totalorder %s16, 1
      %p106 = por %p104, %p105
      %p107 = scmp.ne.s32.totalorder %s99, %s102
      %p108 = scmp.eq.s32.totalorder %s16, 0
      %p109 = por %p107, %p108
      %p110 = scmp.ne.s32.totalorder %s99, %s102
      %p111 = scmp.eq.s32.totalorder %s21, 1
      %p112 = por %p110, %p111
      %p113 = scmp.ne.s32.totalorder %s102, %s103
      %p114 = scmp.eq.s32.totalorder %s21, 0
      %p115 = por %p113, %p114
      %p116 = scmp.ne.s32.totalorder %s102, %s103
      %p117 = scmp.eq.s32.totalorder %s22, 1
      %p118 = por %p116, %p117
      %p120 = scmp.ne.s32.totalorder %s103, %s119
      %p121 = scmp.eq.s32.totalorder %s22, 0
      %p122 = por %p120, %p121
      %p123 = scmp.le.s32.totalorder 1, %s16
      %p124 = scmp.lt.s32.totalorder %s16, 3
      %p125 = pnand %p123, %p124
      %p126 = pneg %p125
      // Predicated region
      $region9: #{last_embedding_forward_batched.1} parent=5 // pred_check
        _
      $region10: #{last_embedding_forward_batched.1} parent=5 // pred_check_branch
        %128 = sbr.rel (%p125) target = $region12
      $region11: #{last_embedding_forward_batched.1} parent=5 // pred_region
        %s129 = ssub.s32 %s16, 1
        // Predicated region
        $region13: #{last_embedding_forward_batched.1} parent=11 // pred_check
          %p130 = pneg %p63
        $region14: #{last_embedding_forward_batched.1} parent=11 // pred_check_branch
          %132 = sbr.rel (%p130) target = $region16
        $region15: #{last_embedding_forward_batched.1} parent=11 // pred_region
          _
        $region16: #{last_embedding_forward_batched.1} parent=11 // pred_fallthru
          _
      $region12: #{last_embedding_forward_batched.1} parent=5 // pred_fallthru
        _
      %p133 = scmp.lt.s32.totalorder %s16, 2
      // Predicated region
      $region17: #{last_embedding_forward_batched.1} parent=5 // pred_check
        %p134 = pneg %p133
      $region18: #{last_embedding_forward_batched.1} parent=5 // pred_check_branch
        %136 = sbr.rel (%p134) target = $region20
      $region19: #{last_embedding_forward_batched.1} parent=5 // pred_region
        // Predicated region
        $region21: #{last_embedding_forward_batched.1} parent=19 // pred_check
          %p137 = pneg %p36
        $region22: #{last_embedding_forward_batched.1} parent=19 // pred_check_branch
          %139 = sbr.rel (%p137) target = $region24
        $region23: #{last_embedding_forward_batched.1} parent=19 // pred_region
          %s140 = sand.u32 %s26, 1
          %s141 = scalar_lea.sflag [#allocation3], %s140
          %s142 = sand.u32 %s26, 1
          %s143 = smul.addr %s142, 64
          %s144 = scalar_lea.vmem [#allocation2], %s143
          %s145 = smul.u32 8, %s16
          %s147 = ssub.s32 1024, 1024
          %148 = vsyncadd %s141, %s147
          %s149 = smul.addr %s145, 128
          %s150 = scalar_lea.hbm %s0, %s149
          %s151 = sshll.u32 %s144, 4
          %s152 = int_to_ptr.vmem [resolvable:$true] %s151
          %157 = dma.hbm_to_vmem [thread:$0]  %s150, 1024, %s152, %s141, 128, 128, 8
        $region24: #{last_embedding_forward_batched.1} parent=19 // pred_fallthru
          _
      $region20: #{last_embedding_forward_batched.1} parent=5 // pred_fallthru
        _
      %p158 = scmp.le.s32.totalorder 1, %s16
      %p159 = scmp.lt.s32.totalorder %s16, 3
      %p160 = pnand %p158, %p159
      %p161 = pneg %p160
      // Predicated region
      $region25: #{last_embedding_forward_batched.1} parent=5 // pred_check
        _
      $region26: #{last_embedding_forward_batched.1} parent=5 // pred_check_branch
        %163 = sbr.rel (%p160) target = $region28
      $region27: #{last_embedding_forward_batched.1} parent=5 // pred_region
        %s164 = ssub.s32 %s16, 1
        %s165 = sand.u32 %s29, 1
        %s166 = scalar_lea.sflag [#allocation3], %s165
        %s167 = sand.u32 %s29, 1
        %s168 = smul.addr %s167, 64
        %s169 = scalar_lea.vmem [#allocation2], %s168
        // Predicated region
        $region29: #{last_embedding_forward_batched.1} parent=27 // pred_check
          %p170 = pneg %p42
        $region30: #{last_embedding_forward_batched.1} parent=27 // pred_check_branch
          %172 = sbr.rel (%p170) target = $region32
        $region31: #{last_embedding_forward_batched.1} parent=27 // pred_region
          %173 = dma.done %s166, 1024
        $region32: #{last_embedding_forward_batched.1} parent=27 // pred_fallthru
          _
        %s174 = sand.u32 %s29, 1
        %s175 = scalar_lea.sflag [#allocation3], %s174
        %s176 = sand.u32 %s29, 1
        %s177 = smul.addr %s176, 64
        %s178 = scalar_lea.vmem [#allocation2], %s177
        %p179 = pneg %p42
        %p180 = pneg %p39
        %p181 = pneg %p63
        %p182 = pneg %p60
        %p183 = pneg %p89
        %p184 = pneg %p86
        %s185 = sand.u32 %s76, 1
        %s186 = scalar_lea.sflag [#allocation4], %s185
        %s187 = sand.u32 %s76, 1
        %s188 = smul.addr %s187, 64
        %s189 = scalar_lea.vmem [#allocation5], %s188
        %p190 = pneg %p115
        %p191 = pneg %p112
        %p192 = scmp.lt.s32.totalorder %s21, 1
        %s193 = scalar_select %p192, %s21, 1
        %s194 = smul.addr %s193, 8
        %s195 = scalar_lea.vmem %s3, %s194
        %s196 = smul.u32 8, %s21
        %s197 = smul.u32 8, %s21
        %p198 = scmp.lt.s32.totalorder %s21, 1
        %s199 = scalar_select %p198, %s21, 1
        %s200 = smul.addr %s199, 8
        %s201 = scalar_lea.vmem %s3, %s200
        %v202 = vld [vmem:[%s169] sm:$0xff]
        %v203 = vld [vmem:[%s169 + $0x8] sm:$0xff]
        %v204 = vld [vmem:[%s169 + $0x10] sm:$0xff]
        %v205 = vld [vmem:[%s169 + $0x18] sm:$0xff]
        %v206 = vld [vmem:[%s169 + $0x20] sm:$0xff]
        %v207 = vld [vmem:[%s169 + $0x28] sm:$0xff]
        %v208 = vld [vmem:[%s169 + $0x30] sm:$0xff]
        %v209 = vld [vmem:[%s169 + $0x38] sm:$0xff]
        %v210 = vld [vmem:[%s1] sm:$0xff]
        %v211 = vld [vmem:[%s1 + $0x8] sm:$0xff]
        %v212 = vld [vmem:[%s1 + $0x10] sm:$0xff]
        %v213 = vld [vmem:[%s1 + $0x18] sm:$0xff]
        %v214 = vld [vmem:[%s1 + $0x20] sm:$0x3]
        %v215 = vlaneseq
        %v216 = vshrl.u32 %v215, 7
        %v217 = vsub.s32 0, %v216
        %v218 = vrot.slane %v214, %v217
        %vm219 = vcmask 261120
        %v221 = vsel %vm219, %v202, 0
        %v224 = vsel %vm219, %v203, 0
        %v227 = vsel %vm219, %v204, 0
        %v230 = vsel %vm219, %v205, 0
        %v233 = vsel %vm219, %v206, 0
        %v236 = vsel %vm219, %v207, 0
        %v239 = vsel %vm219, %v208, 0
        %v242 = vsel %vm219, %v209, 0
        %v245 = vsel %vm219, %v210, 0
        %v248 = vsel %vm219, %v211, 0
        %250 = vmatprep.subr.mxu0 0.0
        %251 = vmatpush1.xpose.msra.mxu0 %v245
        %252 = vmatprep.subr.mxu0 0.0
        %253 = vmatpush1.xpose.msra.mxu0 %v248
        %254 = vmatprep.subr.mxu0 0.0
        %255 = vmatpush1.xpose.msra.mxu0 0.0
        %256 = vmatprep.subr.mxu0 0.0
        %257 = vmatpush1.xpose.msra.mxu0 0.0
        %258 = vmatprep.subr.mxu0 0.0
        %259 = vmatpush1.xpose.msra.mxu0 0.0
        %260 = vmatprep.subr.mxu0 0.0
        %261 = vmatpush1.xpose.msra.mxu0 0.0
        %262 = vmatprep.subr.mxu0 0.0
        %263 = vmatpush1.xpose.msra.mxu0 0.0
        %264 = vmatprep.subr.mxu0 0.0
        %265 = vmatpush1.xpose.msra.mxu0 0.0
        %266 = vmatprep.subr.mxu0 0.0
        %267 = vmatpush1.xpose.msra.mxu0 0.0
        %268 = vmatprep.subr.mxu0 0.0
        %269 = vmatpush1.xpose.msra.mxu0 0.0
        %270 = vmatprep.subr.mxu0 0.0
        %271 = vmatpush1.xpose.msra.mxu0 0.0
        %272 = vmatprep.subr.mxu0 0.0
        %273 = vmatpush1.xpose.msra.mxu0 0.0
        %274 = vmatprep.subr.mxu0 0.0
        %275 = vmatpush1.xpose.msra.mxu0 0.0
        %276 = vmatprep.subr.mxu0 0.0
        %277 = vmatpush1.xpose.msra.mxu0 0.0
        %278 = vmatprep.subr.mxu0 0.0
        %279 = vmatpush1.xpose.msra.mxu0 0.0
        %280 = vmatprep.subr.mxu0 0.0
        %281 = vmatpush1.xpose.msra.mxu0 0.0
        %282 = vmatprep.subr.mxu0 0.0
        %283 = vmatpush1.xpose.msra.mxu0 0.0
        %284 = vmatprep.subr.mxu0 0.0
        %285 = vmatpush1.xpose.msra.mxu0 0.0
        %286 = vmatprep.subr.mxu0 0.0
        %287 = vmatpush1.xpose.msra.mxu0 0.0
        %288 = vmatprep.subr.mxu0 0.0
        %289 = vmatpush1.xpose.msra.mxu0 0.0
        %290 = vmatprep.subr.mxu0 0.0
        %291 = vmatpush1.xpose.msra.mxu0 0.0
        %292 = vmatprep.subr.mxu0 0.0
        %293 = vmatpush1.xpose.msra.mxu0 0.0
        %294 = vmatprep.subr.mxu0 0.0
        %295 = vmatpush1.xpose.msra.mxu0 0.0
        %296 = vmatprep.subr.mxu0 0.0
        %297 = vmatpush1.xpose.msra.mxu0 0.0
        %298 = vmatprep.subr.mxu0 0.0
        %299 = vmatpush1.xpose.msra.mxu0 0.0
        %300 = vmatprep.subr.mxu0 0.0
        %301 = vmatpush1.xpose.msra.mxu0 0.0
        %302 = vmatprep.subr.mxu0 0.0
        %303 = vmatpush1.xpose.msra.mxu0 0.0
        %304 = vmatprep.subr.mxu0 0.0
        %305 = vmatpush1.xpose.msra.mxu0 0.0
        %306 = vmatprep.subr.mxu0 0.0
        %307 = vmatpush1.xpose.msra.mxu0 0.0
        %308 = vmatprep.subr.mxu0 0.0
        %309 = vmatpush1.xpose.msra.mxu0 0.0
        %310 = vmatprep.subr.mxu0 0.0
        %311 = vmatpush1.xpose.msra.mxu0 0.0
        %312 = vmatprep.subr.mxu0 0.0
        %313 = vmatpush1.xpose.msra.mxu0 0.0
        %314 = vmatprep.mubr.f32.mxu0 0.0
        %315 = vmatmul.mubr.f32.gmra.mrb[0].mxu0 %v221
        %v316 = vpop.f32.mrb[0].mxu0
        %v317 = vadd.f32 %v218, %v316
        %v318 = vpop.f32.mrb[0].mxu0
        %319 = vmatprep.mubr.f32.mxu0 0.0
        %320 = vmatmul.mubr.f32.gmra.mrb[0].mxu0 %v224
        %v321 = vpop.f32.mrb[0].mxu0
        %v322 = vadd.f32 %v218, %v321
        %v323 = vpop.f32.mrb[0].mxu0
        %324 = vmatprep.mubr.f32.mxu0 0.0
        %325 = vmatmul.mubr.f32.gmra.mrb[0].mxu0 %v227
        %v326 = vpop.f32.mrb[0].mxu0
        %v327 = vadd.f32 %v218, %v326
        %v328 = vpop.f32.mrb[0].mxu0
        %329 = vmatprep.mubr.f32.mxu0 0.0
        %330 = vmatmul.mubr.f32.gmra.mrb[0].mxu0 %v230
        %v331 = vpop.f32.mrb[0].mxu0
        %v332 = vadd.f32 %v218, %v331
        %v333 = vpop.f32.mrb[0].mxu0
        %334 = vmatprep.mubr.f32.mxu0 0.0
        %335 = vmatmul.mubr.f32.gmra.mrb[0].mxu0 %v233
        %v336 = vpop.f32.mrb[0].mxu0
        %v337 = vadd.f32 %v218, %v336
        %v338 = vpop.f32.mrb[0].mxu0
        %339 = vmatprep.mubr.f32.mxu0 0.0
        %340 = vmatmul.mubr.f32.gmra.mrb[0].mxu0 %v236
        %v341 = vpop.f32.mrb[0].mxu0
        %v342 = vadd.f32 %v218, %v341
        %v343 = vpop.f32.mrb[0].mxu0
        %344 = vmatprep.mubr.f32.mxu0 0.0
        %345 = vmatmul.mubr.f32.gmra.mrb[0].mxu0 %v239
        %v346 = vpop.f32.mrb[0].mxu0
        %v347 = vadd.f32 %v218, %v346
        %v348 = vpop.f32.mrb[0].mxu0
        %349 = vmatprep.mubr.f32.mxu0 0.0
        %350 = vmatmul.mubr.f32.gmra.mrb[0].mxu0 %v242
        %v351 = vpop.f32.mrb[0].mxu0
        %v352 = vadd.f32 %v218, %v351
        %v353 = vpop.f32.mrb[0].mxu0
        %354 = vdwg.mxu0
        %v355 = vtanh.pop %v317
        %v356 = vtanh.pop %v322
        %v357 = vtanh.pop %v327
        %v358 = vtanh.pop %v332
        %v359 = vtanh.pop %v337
        %v360 = vtanh.pop %v342
        %v361 = vtanh.pop %v347
        %v362 = vtanh.pop %v352
        %v363 = vlaneseq
        %v364 = vshrl.u32 %v363, 7
        %v365 = vsub.s32 1, %v364
        %v366 = vrot.slane %v214, %v365
        %vm367 = vcmask 130048
        %v369 = vsel %vm367, %v355, 0
        %v372 = vsel %vm367, %v356, 0
        %v375 = vsel %vm367, %v357, 0
        %v378 = vsel %vm367, %v358, 0
        %v381 = vsel %vm367, %v359, 0
        %v384 = vsel %vm367, %v360, 0
        %v387 = vsel %vm367, %v361, 0
        %v390 = vsel %vm367, %v362, 0
        %v393 = vsel %vm367, %v212, 0
        %v396 = vsel %vm367, %v213, 0
        %398 = vmatprep.subr.mxu0 0.0
        %399 = vmatpush1.xpose.msra.mxu0 %v393
        %400 = vmatprep.subr.mxu0 0.0
        %401 = vmatpush1.xpose.msra.mxu0 %v396
        %402 = vmatprep.subr.mxu0 0.0
        %403 = vmatpush1.xpose.msra.mxu0 0.0
        %404 = vmatprep.subr.mxu0 0.0
        %405 = vmatpush1.xpose.msra.mxu0 0.0
        %406 = vmatprep.subr.mxu0 0.0
        %407 = vmatpush1.xpose.msra.mxu0 0.0
        %408 = vmatprep.subr.mxu0 0.0
        %409 = vmatpush1.xpose.msra.mxu0 0.0
        %410 = vmatprep.subr.mxu0 0.0
        %411 = vmatpush1.xpose.msra.mxu0 0.0
        %412 = vmatprep.subr.mxu0 0.0
        %413 = vmatpush1.xpose.msra.mxu0 0.0
        %414 = vmatprep.subr.mxu0 0.0
        %415 = vmatpush1.xpose.msra.mxu0 0.0
        %416 = vmatprep.subr.mxu0 0.0
        %417 = vmatpush1.xpose.msra.mxu0 0.0
        %418 = vmatprep.subr.mxu0 0.0
        %419 = vmatpush1.xpose.msra.mxu0 0.0
        %420 = vmatprep.subr.mxu0 0.0
        %421 = vmatpush1.xpose.msra.mxu0 0.0
        %422 = vmatprep.subr.mxu0 0.0
        %423 = vmatpush1.xpose.msra.mxu0 0.0
        %424 = vmatprep.subr.mxu0 0.0
        %425 = vmatpush1.xpose.msra.mxu0 0.0
        %426 = vmatprep.subr.mxu0 0.0
        %427 = vmatpush1.xpose.msra.mxu0 0.0
        %428 = vmatprep.subr.mxu0 0.0
        %429 = vmatpush1.xpose.msra.mxu0 0.0
        %430 = vmatprep.subr.mxu0 0.0
        %431 = vmatpush1.xpose.msra.mxu0 0.0
        %432 = vmatprep.subr.mxu0 0.0
        %433 = vmatpush1.xpose.msra.mxu0 0.0
        %434 = vmatprep.subr.mxu0 0.0
        %435 = vmatpush1.xpose.msra.mxu0 0.0
        %436 = vmatprep.subr.mxu0 0.0
        %437 = vmatpush1.xpose.msra.mxu0 0.0
        %438 = vmatprep.subr.mxu0 0.0
        %439 = vmatpush1.xpose.msra.mxu0 0.0
        %440 = vmatprep.subr.mxu0 0.0
        %441 = vmatpush1.xpose.msra.mxu0 0.0
        %442 = vmatprep.subr.mxu0 0.0
        %443 = vmatpush1.xpose.msra.mxu0 0.0
        %444 = vmatprep.subr.mxu0 0.0
        %445 = vmatpush1.xpose.msra.mxu0 0.0
        %446 = vmatprep.subr.mxu0 0.0
        %447 = vmatpush1.xpose.msra.mxu0 0.0
        %448 = vmatprep.subr.mxu0 0.0
        %449 = vmatpush1.xpose.msra.mxu0 0.0
        %450 = vmatprep.subr.mxu0 0.0
        %451 = vmatpush1.xpose.msra.mxu0 0.0
        %452 = vmatprep.subr.mxu0 0.0
        %453 = vmatpush1.xpose.msra.mxu0 0.0
        %454 = vmatprep.subr.mxu0 0.0
        %455 = vmatpush1.xpose.msra.mxu0 0.0
        %456 = vmatprep.subr.mxu0 0.0
        %457 = vmatpush1.xpose.msra.mxu0 0.0
        %458 = vmatprep.subr.mxu0 0.0
        %459 = vmatpush1.xpose.msra.mxu0 0.0
        %460 = vmatprep.subr.mxu0 0.0
        %461 = vmatpush1.xpose.msra.mxu0 0.0
        %462 = vmatprep.mubr.f32.mxu0 0.0
        %463 = vmatmul.mubr.f32.gmra.mrb[0].mxu0 %v369
        %v464 = vpop.f32.mrb[0].mxu0
        %v465 = vadd.f32 %v366, %v464
        %v466 = vpop.f32.mrb[0].mxu0
        %467 = vmatprep.mubr.f32.mxu0 0.0
        %468 = vmatmul.mubr.f32.gmra.mrb[0].mxu0 %v372
        %v469 = vpop.f32.mrb[0].mxu0
        %v470 = vadd.f32 %v366, %v469
        %v471 = vpop.f32.mrb[0].mxu0
        %472 = vmatprep.mubr.f32.mxu0 0.0
        %473 = vmatmul.mubr.f32.gmra.mrb[0].mxu0 %v375
        %v474 = vpop.f32.mrb[0].mxu0
        %v475 = vadd.f32 %v366, %v474
        %v476 = vpop.f32.mrb[0].mxu0
        %477 = vmatprep.mubr.f32.mxu0 0.0
        %478 = vmatmul.mubr.f32.gmra.mrb[0].mxu0 %v378
        %v479 = vpop.f32.mrb[0].mxu0
        %v480 = vadd.f32 %v366, %v479
        %v481 = vpop.f32.mrb[0].mxu0
        %482 = vmatprep.mubr.f32.mxu0 0.0
        %483 = vmatmul.mubr.f32.gmra.mrb[0].mxu0 %v381
        %v484 = vpop.f32.mrb[0].mxu0
        %v485 = vadd.f32 %v366, %v484
        %v486 = vpop.f32.mrb[0].mxu0
        %487 = vmatprep.mubr.f32.mxu0 0.0
        %488 = vmatmul.mubr.f32.gmra.mrb[0].mxu0 %v384
        %v489 = vpop.f32.mrb[0].mxu0
        %v490 = vadd.f32 %v366, %v489
        %v491 = vpop.f32.mrb[0].mxu0
        %492 = vmatprep.mubr.f32.mxu0 0.0
        %493 = vmatmul.mubr.f32.gmra.mrb[0].mxu0 %v387
        %v494 = vpop.f32.mrb[0].mxu0
        %v495 = vadd.f32 %v366, %v494
        %v496 = vpop.f32.mrb[0].mxu0
        %497 = vmatprep.mubr.f32.mxu0 0.0
        %498 = vmatmul.mubr.f32.gmra.mrb[0].mxu0 %v390
        %v499 = vpop.f32.mrb[0].mxu0
        %v500 = vadd.f32 %v366, %v499
        %v501 = vpop.f32.mrb[0].mxu0
        %502 = vdwg.mxu0
        %503 = vst.msk [vmem:[%s189] sm:$0xff] %vm367, %v465
        %504 = vst.msk [vmem:[%s189 + $0x8] sm:$0xff] %vm367, %v470
        %505 = vst.msk [vmem:[%s189 + $0x10] sm:$0xff] %vm367, %v475
        %506 = vst.msk [vmem:[%s189 + $0x18] sm:$0xff] %vm367, %v480
        %507 = vst.msk [vmem:[%s189 + $0x20] sm:$0xff] %vm367, %v485
        %508 = vst.msk [vmem:[%s189 + $0x28] sm:$0xff] %vm367, %v490
        %509 = vst.msk [vmem:[%s189 + $0x30] sm:$0xff] %vm367, %v495
        %510 = vst.msk [vmem:[%s189 + $0x38] sm:$0xff] %vm367, %v500
        %v511 = vlaneseq
        %v512 = vshrl.u32 %v511, 7
        %v513 = vlaneseq
        %v514 = vand.u32 %v513, 127
        %vm515 = vcmp.eq.s32.totalorder %v512, %v514
        %v517 = vsel %vm367, %v465, 0
        %519 = vmatprep.subr.mxu0 0.0
        %520 = vmatpush1.xpose.msra.mxu0 %v517
        %521 = vmatprep.subr.mxu0 0.0
        %522 = vmatpush1.xpose.msra.mxu0 0.0
        %523 = vmatprep.subr.mxu0 0.0
        %524 = vmatpush1.xpose.msra.mxu0 0.0
        %525 = vmatprep.subr.mxu0 0.0
        %526 = vmatpush1.xpose.msra.mxu0 0.0
        %527 = vmatprep.subr.mxu0 0.0
        %528 = vmatpush1.xpose.msra.mxu0 0.0
        %529 = vmatprep.subr.mxu0 0.0
        %530 = vmatpush1.xpose.msra.mxu0 0.0
        %531 = vmatprep.subr.mxu0 0.0
        %532 = vmatpush1.xpose.msra.mxu0 0.0
        %533 = vmatprep.subr.mxu0 0.0
        %534 = vmatpush1.xpose.msra.mxu0 0.0
        %535 = vmatprep.subr.mxu0 0.0
        %536 = vmatpush1.xpose.msra.mxu0 0.0
        %537 = vmatprep.subr.mxu0 0.0
        %538 = vmatpush1.xpose.msra.mxu0 0.0
        %539 = vmatprep.subr.mxu0 0.0
        %540 = vmatpush1.xpose.msra.mxu0 0.0
        %541 = vmatprep.subr.mxu0 0.0
        %542 = vmatpush1.xpose.msra.mxu0 0.0
        %543 = vmatprep.subr.mxu0 0.0
        %544 = vmatpush1.xpose.msra.mxu0 0.0
        %545 = vmatprep.subr.mxu0 0.0
        %546 = vmatpush1.xpose.msra.mxu0 0.0
        %547 = vmatprep.subr.mxu0 0.0
        %548 = vmatpush1.xpose.msra.mxu0 0.0
        %549 = vmatprep.subr.mxu0 0.0
        %550 = vmatpush1.xpose.msra.mxu0 0.0
        %551 = vmatprep.subr.mxu0 0.0
        %552 = vmatpush1.xpose.msra.mxu0 0.0
        %553 = vmatprep.subr.mxu0 0.0
        %554 = vmatpush1.xpose.msra.mxu0 0.0
        %555 = vmatprep.subr.mxu0 0.0
        %556 = vmatpush1.xpose.msra.mxu0 0.0
        %557 = vmatprep.subr.mxu0 0.0
        %558 = vmatpush1.xpose.msra.mxu0 0.0
        %559 = vmatprep.subr.mxu0 0.0
        %560 = vmatpush1.xpose.msra.mxu0 0.0
        %561 = vmatprep.subr.mxu0 0.0
        %562 = vmatpush1.xpose.msra.mxu0 0.0
        %563 = vmatprep.subr.mxu0 0.0
        %564 = vmatpush1.xpose.msra.mxu0 0.0
        %565 = vmatprep.subr.mxu0 0.0
        %566 = vmatpush1.xpose.msra.mxu0 0.0
        %567 = vmatprep.subr.mxu0 0.0
        %568 = vmatpush1.xpose.msra.mxu0 0.0
        %569 = vmatprep.subr.mxu0 0.0
        %570 = vmatpush1.xpose.msra.mxu0 0.0
        %571 = vmatprep.subr.mxu0 0.0
        %572 = vmatpush1.xpose.msra.mxu0 0.0
        %573 = vmatprep.subr.mxu0 0.0
        %574 = vmatpush1.xpose.msra.mxu0 0.0
        %575 = vmatprep.subr.mxu0 0.0
        %576 = vmatpush1.xpose.msra.mxu0 0.0
        %577 = vmatprep.subr.mxu0 0.0
        %578 = vmatpush1.xpose.msra.mxu0 0.0
        %579 = vmatprep.subr.mxu0 0.0
        %580 = vmatpush1.xpose.msra.mxu0 0.0
        %581 = vmatprep.subr.mxu0 0.0
        %582 = vmatpush1.xpose.msra.mxu0 0.0
        %583 = vmatprep.mubr.f32.mxu0 0.0
        %584 = vmatmul.mubr.f32.gmra.mrb[0].mxu0 %v517
        %v585 = vpop.f32.mrb[0].mxu0
        %v586 = vadd.f32 0.0, %v585
        %v587 = vpop.f32.mrb[0].mxu0
        %588 = vdwg.mxu0
        %v590 = vsel %vm367, %v470, 0
        %592 = vmatprep.subr.mxu0 0.0
        %593 = vmatpush1.xpose.msra.mxu0 %v590
        %594 = vmatprep.subr.mxu0 0.0
        %595 = vmatpush1.xpose.msra.mxu0 0.0
        %596 = vmatprep.subr.mxu0 0.0
        %597 = vmatpush1.xpose.msra.mxu0 0.0
        %598 = vmatprep.subr.mxu0 0.0
        %599 = vmatpush1.xpose.msra.mxu0 0.0
        %600 = vmatprep.subr.mxu0 0.0
        %601 = vmatpush1.xpose.msra.mxu0 0.0
        %602 = vmatprep.subr.mxu0 0.0
        %603 = vmatpush1.xpose.msra.mxu0 0.0
        %604 = vmatprep.subr.mxu0 0.0
        %605 = vmatpush1.xpose.msra.mxu0 0.0
        %606 = vmatprep.subr.mxu0 0.0
        %607 = vmatpush1.xpose.msra.mxu0 0.0
        %608 = vmatprep.subr.mxu0 0.0
        %609 = vmatpush1.xpose.msra.mxu0 0.0
        %610 = vmatprep.subr.mxu0 0.0
        %611 = vmatpush1.xpose.msra.mxu0 0.0
        %612 = vmatprep.subr.mxu0 0.0
        %613 = vmatpush1.xpose.msra.mxu0 0.0
        %614 = vmatprep.subr.mxu0 0.0
        %615 = vmatpush1.xpose.msra.mxu0 0.0
        %616 = vmatprep.subr.mxu0 0.0
        %617 = vmatpush1.xpose.msra.mxu0 0.0
        %618 = vmatprep.subr.mxu0 0.0
        %619 = vmatpush1.xpose.msra.mxu0 0.0
        %620 = vmatprep.subr.mxu0 0.0
        %621 = vmatpush1.xpose.msra.mxu0 0.0
        %622 = vmatprep.subr.mxu0 0.0
        %623 = vmatpush1.xpose.msra.mxu0 0.0
        %624 = vmatprep.subr.mxu0 0.0
        %625 = vmatpush1.xpose.msra.mxu0 0.0
        %626 = vmatprep.subr.mxu0 0.0
        %627 = vmatpush1.xpose.msra.mxu0 0.0
        %628 = vmatprep.subr.mxu0 0.0
        %629 = vmatpush1.xpose.msra.mxu0 0.0
        %630 = vmatprep.subr.mxu0 0.0
        %631 = vmatpush1.xpose.msra.mxu0 0.0
        %632 = vmatprep.subr.mxu0 0.0
        %633 = vmatpush1.xpose.msra.mxu0 0.0
        %634 = vmatprep.subr.mxu0 0.0
        %635 = vmatpush1.xpose.msra.mxu0 0.0
        %636 = vmatprep.subr.mxu0 0.0
        %637 = vmatpush1.xpose.msra.mxu0 0.0
        %638 = vmatprep.subr.mxu0 0.0
        %639 = vmatpush1.xpose.msra.mxu0 0.0
        %640 = vmatprep.subr.mxu0 0.0
        %641 = vmatpush1.xpose.msra.mxu0 0.0
        %642 = vmatprep.subr.mxu0 0.0
        %643 = vmatpush1.xpose.msra.mxu0 0.0
        %644 = vmatprep.subr.mxu0 0.0
        %645 = vmatpush1.xpose.msra.mxu0 0.0
        %646 = vmatprep.subr.mxu0 0.0
        %647 = vmatpush1.xpose.msra.mxu0 0.0
        %648 = vmatprep.subr.mxu0 0.0
        %649 = vmatpush1.xpose.msra.mxu0 0.0
        %650 = vmatprep.subr.mxu0 0.0
        %651 = vmatpush1.xpose.msra.mxu0 0.0
        %652 = vmatprep.subr.mxu0 0.0
        %653 = vmatpush1.xpose.msra.mxu0 0.0
        %654 = vmatprep.subr.mxu0 0.0
        %655 = vmatpush1.xpose.msra.mxu0 0.0
        %656 = vmatprep.mubr.f32.mxu0 0.0
        %657 = vmatmul.mubr.f32.gmra.mrb[0].mxu0 %v590
        %v658 = vpop.f32.mrb[0].mxu0
        %v659 = vadd.f32 0.0, %v658
        %v660 = vpop.f32.mrb[0].mxu0
        %661 = vdwg.mxu0
        %v663 = vsel %vm367, %v475, 0
        %665 = vmatprep.subr.mxu0 0.0
        %666 = vmatpush1.xpose.msra.mxu0 %v663
        %667 = vmatprep.subr.mxu0 0.0
        %668 = vmatpush1.xpose.msra.mxu0 0.0
        %669 = vmatprep.subr.mxu0 0.0
        %670 = vmatpush1.xpose.msra.mxu0 0.0
        %671 = vmatprep.subr.mxu0 0.0
        %672 = vmatpush1.xpose.msra.mxu0 0.0
        %673 = vmatprep.subr.mxu0 0.0
        %674 = vmatpush1.xpose.msra.mxu0 0.0
        %675 = vmatprep.subr.mxu0 0.0
        %676 = vmatpush1.xpose.msra.mxu0 0.0
        %677 = vmatprep.subr.mxu0 0.0
        %678 = vmatpush1.xpose.msra.mxu0 0.0
        %679 = vmatprep.subr.mxu0 0.0
        %680 = vmatpush1.xpose.msra.mxu0 0.0
        %681 = vmatprep.subr.mxu0 0.0
        %682 = vmatpush1.xpose.msra.mxu0 0.0
        %683 = vmatprep.subr.mxu0 0.0
        %684 = vmatpush1.xpose.msra.mxu0 0.0
        %685 = vmatprep.subr.mxu0 0.0
        %686 = vmatpush1.xpose.msra.mxu0 0.0
        %687 = vmatprep.subr.mxu0 0.0
        %688 = vmatpush1.xpose.msra.mxu0 0.0
        %689 = vmatprep.subr.mxu0 0.0
        %690 = vmatpush1.xpose.msra.mxu0 0.0
        %691 = vmatprep.subr.mxu0 0.0
        %692 = vmatpush1.xpose.msra.mxu0 0.0
        %693 = vmatprep.subr.mxu0 0.0
        %694 = vmatpush1.xpose.msra.mxu0 0.0
        %695 = vmatprep.subr.mxu0 0.0
        %696 = vmatpush1.xpose.msra.mxu0 0.0
        %697 = vmatprep.subr.mxu0 0.0
        %698 = vmatpush1.xpose.msra.mxu0 0.0
        %699 = vmatprep.subr.mxu0 0.0
        %700 = vmatpush1.xpose.msra.mxu0 0.0
        %701 = vmatprep.subr.mxu0 0.0
        %702 = vmatpush1.xpose.msra.mxu0 0.0
        %703 = vmatprep.subr.mxu0 0.0
        %704 = vmatpush1.xpose.msra.mxu0 0.0
        %705 = vmatprep.subr.mxu0 0.0
        %706 = vmatpush1.xpose.msra.mxu0 0.0
        %707 = vmatprep.subr.mxu0 0.0
        %708 = vmatpush1.xpose.msra.mxu0 0.0
        %709 = vmatprep.subr.mxu0 0.0
        %710 = vmatpush1.xpose.msra.mxu0 0.0
        %711 = vmatprep.subr.mxu0 0.0
        %712 = vmatpush1.xpose.msra.mxu0 0.0
        %713 = vmatprep.subr.mxu0 0.0
        %714 = vmatpush1.xpose.msra.mxu0 0.0
        %715 = vmatprep.subr.mxu0 0.0
        %716 = vmatpush1.xpose.msra.mxu0 0.0
        %717 = vmatprep.subr.mxu0 0.0
        %718 = vmatpush1.xpose.msra.mxu0 0.0
        %719 = vmatprep.subr.mxu0 0.0
        %720 = vmatpush1.xpose.msra.mxu0 0.0
        %721 = vmatprep.subr.mxu0 0.0
        %722 = vmatpush1.xpose.msra.mxu0 0.0
        %723 = vmatprep.subr.mxu0 0.0
        %724 = vmatpush1.xpose.msra.mxu0 0.0
        %725 = vmatprep.subr.mxu0 0.0
        %726 = vmatpush1.xpose.msra.mxu0 0.0
        %727 = vmatprep.subr.mxu0 0.0
        %728 = vmatpush1.xpose.msra.mxu0 0.0
        %729 = vmatprep.mubr.f32.mxu0 0.0
        %730 = vmatmul.mubr.f32.gmra.mrb[0].mxu0 %v663
        %v731 = vpop.f32.mrb[0].mxu0
        %v732 = vadd.f32 0.0, %v731
        %v733 = vpop.f32.mrb[0].mxu0
        %734 = vdwg.mxu0
        %v736 = vsel %vm367, %v480, 0
        %738 = vmatprep.subr.mxu0 0.0
        %739 = vmatpush1.xpose.msra.mxu0 %v736
        %740 = vmatprep.subr.mxu0 0.0
        %741 = vmatpush1.xpose.msra.mxu0 0.0
        %742 = vmatprep.subr.mxu0 0.0
        %743 = vmatpush1.xpose.msra.mxu0 0.0
        %744 = vmatprep.subr.mxu0 0.0
        %745 = vmatpush1.xpose.msra.mxu0 0.0
        %746 = vmatprep.subr.mxu0 0.0
        %747 = vmatpush1.xpose.msra.mxu0 0.0
        %748 = vmatprep.subr.mxu0 0.0
        %749 = vmatpush1.xpose.msra.mxu0 0.0
        %750 = vmatprep.subr.mxu0 0.0
        %751 = vmatpush1.xpose.msra.mxu0 0.0
        %752 = vmatprep.subr.mxu0 0.0
        %753 = vmatpush1.xpose.msra.mxu0 0.0
        %754 = vmatprep.subr.mxu0 0.0
        %755 = vmatpush1.xpose.msra.mxu0 0.0
        %756 = vmatprep.subr.mxu0 0.0
        %757 = vmatpush1.xpose.msra.mxu0 0.0
        %758 = vmatprep.subr.mxu0 0.0
        %759 = vmatpush1.xpose.msra.mxu0 0.0
        %760 = vmatprep.subr.mxu0 0.0
        %761 = vmatpush1.xpose.msra.mxu0 0.0
        %762 = vmatprep.subr.mxu0 0.0
        %763 = vmatpush1.xpose.msra.mxu0 0.0
        %764 = vmatprep.subr.mxu0 0.0
        %765 = vmatpush1.xpose.msra.mxu0 0.0
        %766 = vmatprep.subr.mxu0 0.0
        %767 = vmatpush1.xpose.msra.mxu0 0.0
        %768 = vmatprep.subr.mxu0 0.0
        %769 = vmatpush1.xpose.msra.mxu0 0.0
        %770 = vmatprep.subr.mxu0 0.0
        %771 = vmatpush1.xpose.msra.mxu0 0.0
        %772 = vmatprep.subr.mxu0 0.0
        %773 = vmatpush1.xpose.msra.mxu0 0.0
        %774 = vmatprep.subr.mxu0 0.0
        %775 = vmatpush1.xpose.msra.mxu0 0.0
        %776 = vmatprep.subr.mxu0 0.0
        %777 = vmatpush1.xpose.msra.mxu0 0.0
        %778 = vmatprep.subr.mxu0 0.0
        %779 = vmatpush1.xpose.msra.mxu0 0.0
        %780 = vmatprep.subr.mxu0 0.0
        %781 = vmatpush1.xpose.msra.mxu0 0.0
        %782 = vmatprep.subr.mxu0 0.0
        %783 = vmatpush1.xpose.msra.mxu0 0.0
        %784 = vmatprep.subr.mxu0 0.0
        %785 = vmatpush1.xpose.msra.mxu0 0.0
        %786 = vmatprep.subr.mxu0 0.0
        %787 = vmatpush1.xpose.msra.mxu0 0.0
        %788 = vmatprep.subr.mxu0 0.0
        %789 = vmatpush1.xpose.msra.mxu0 0.0
        %790 = vmatprep.subr.mxu0 0.0
        %791 = vmatpush1.xpose.msra.mxu0 0.0
        %792 = vmatprep.subr.mxu0 0.0
        %793 = vmatpush1.xpose.msra.mxu0 0.0
        %794 = vmatprep.subr.mxu0 0.0
        %795 = vmatpush1.xpose.msra.mxu0 0.0
        %796 = vmatprep.subr.mxu0 0.0
        %797 = vmatpush1.xpose.msra.mxu0 0.0
        %798 = vmatprep.subr.mxu0 0.0
        %799 = vmatpush1.xpose.msra.mxu0 0.0
        %800 = vmatprep.subr.mxu0 0.0
        %801 = vmatpush1.xpose.msra.mxu0 0.0
        %802 = vmatprep.mubr.f32.mxu0 0.0
        %803 = vmatmul.mubr.f32.gmra.mrb[0].mxu0 %v736
        %v804 = vpop.f32.mrb[0].mxu0
        %v805 = vadd.f32 0.0, %v804
        %v806 = vpop.f32.mrb[0].mxu0
        %807 = vdwg.mxu0
        %v809 = vsel %vm367, %v485, 0
        %811 = vmatprep.subr.mxu0 0.0
        %812 = vmatpush1.xpose.msra.mxu0 %v809
        %813 = vmatprep.subr.mxu0 0.0
        %814 = vmatpush1.xpose.msra.mxu0 0.0
        %815 = vmatprep.subr.mxu0 0.0
        %816 = vmatpush1.xpose.msra.mxu0 0.0
        %817 = vmatprep.subr.mxu0 0.0
        %818 = vmatpush1.xpose.msra.mxu0 0.0
        %819 = vmatprep.subr.mxu0 0.0
        %820 = vmatpush1.xpose.msra.mxu0 0.0
        %821 = vmatprep.subr.mxu0 0.0
        %822 = vmatpush1.xpose.msra.mxu0 0.0
        %823 = vmatprep.subr.mxu0 0.0
        %824 = vmatpush1.xpose.msra.mxu0 0.0
        %825 = vmatprep.subr.mxu0 0.0
        %826 = vmatpush1.xpose.msra.mxu0 0.0
        %827 = vmatprep.subr.mxu0 0.0
        %828 = vmatpush1.xpose.msra.mxu0 0.0
        %829 = vmatprep.subr.mxu0 0.0
        %830 = vmatpush1.xpose.msra.mxu0 0.0
        %831 = vmatprep.subr.mxu0 0.0
        %832 = vmatpush1.xpose.msra.mxu0 0.0
        %833 = vmatprep.subr.mxu0 0.0
        %834 = vmatpush1.xpose.msra.mxu0 0.0
        %835 = vmatprep.subr.mxu0 0.0
        %836 = vmatpush1.xpose.msra.mxu0 0.0
        %837 = vmatprep.subr.mxu0 0.0
        %838 = vmatpush1.xpose.msra.mxu0 0.0
        %839 = vmatprep.subr.mxu0 0.0
        %840 = vmatpush1.xpose.msra.mxu0 0.0
        %841 = vmatprep.subr.mxu0 0.0
        %842 = vmatpush1.xpose.msra.mxu0 0.0
        %843 = vmatprep.subr.mxu0 0.0
        %844 = vmatpush1.xpose.msra.mxu0 0.0
        %845 = vmatprep.subr.mxu0 0.0
        %846 = vmatpush1.xpose.msra.mxu0 0.0
        %847 = vmatprep.subr.mxu0 0.0
        %848 = vmatpush1.xpose.msra.mxu0 0.0
        %849 = vmatprep.subr.mxu0 0.0
        %850 = vmatpush1.xpose.msra.mxu0 0.0
        %851 = vmatprep.subr.mxu0 0.0
        %852 = vmatpush1.xpose.msra.mxu0 0.0
        %853 = vmatprep.subr.mxu0 0.0
        %854 = vmatpush1.xpose.msra.mxu0 0.0
        %855 = vmatprep.subr.mxu0 0.0
        %856 = vmatpush1.xpose.msra.mxu0 0.0
        %857 = vmatprep.subr.mxu0 0.0
        %858 = vmatpush1.xpose.msra.mxu0 0.0
        %859 = vmatprep.subr.mxu0 0.0
        %860 = vmatpush1.xpose.msra.mxu0 0.0
        %861 = vmatprep.subr.mxu0 0.0
        %862 = vmatpush1.xpose.msra.mxu0 0.0
        %863 = vmatprep.subr.mxu0 0.0
        %864 = vmatpush1.xpose.msra.mxu0 0.0
        %865 = vmatprep.subr.mxu0 0.0
        %866 = vmatpush1.xpose.msra.mxu0 0.0
        %867 = vmatprep.subr.mxu0 0.0
        %868 = vmatpush1.xpose.msra.mxu0 0.0
        %869 = vmatprep.subr.mxu0 0.0
        %870 = vmatpush1.xpose.msra.mxu0 0.0
        %871 = vmatprep.subr.mxu0 0.0
        %872 = vmatpush1.xpose.msra.mxu0 0.0
        %873 = vmatprep.subr.mxu0 0.0
        %874 = vmatpush1.xpose.msra.mxu0 0.0
        %875 = vmatprep.mubr.f32.mxu0 0.0
        %876 = vmatmul.mubr.f32.gmra.mrb[0].mxu0 %v809
        %v877 = vpop.f32.mrb[0].mxu0
        %v878 = vadd.f32 0.0, %v877
        %v879 = vpop.f32.mrb[0].mxu0
        %880 = vdwg.mxu0
        %v882 = vsel %vm367, %v490, 0
        %884 = vmatprep.subr.mxu0 0.0
        %885 = vmatpush1.xpose.msra.mxu0 %v882
        %886 = vmatprep.subr.mxu0 0.0
        %887 = vmatpush1.xpose.msra.mxu0 0.0
        %888 = vmatprep.subr.mxu0 0.0
        %889 = vmatpush1.xpose.msra.mxu0 0.0
        %890 = vmatprep.subr.mxu0 0.0
        %891 = vmatpush1.xpose.msra.mxu0 0.0
        %892 = vmatprep.subr.mxu0 0.0
        %893 = vmatpush1.xpose.msra.mxu0 0.0
        %894 = vmatprep.subr.mxu0 0.0
        %895 = vmatpush1.xpose.msra.mxu0 0.0
        %896 = vmatprep.subr.mxu0 0.0
        %897 = vmatpush1.xpose.msra.mxu0 0.0
        %898 = vmatprep.subr.mxu0 0.0
        %899 = vmatpush1.xpose.msra.mxu0 0.0
        %900 = vmatprep.subr.mxu0 0.0
        %901 = vmatpush1.xpose.msra.mxu0 0.0
        %902 = vmatprep.subr.mxu0 0.0
        %903 = vmatpush1.xpose.msra.mxu0 0.0
        %904 = vmatprep.subr.mxu0 0.0
        %905 = vmatpush1.xpose.msra.mxu0 0.0
        %906 = vmatprep.subr.mxu0 0.0
        %907 = vmatpush1.xpose.msra.mxu0 0.0
        %908 = vmatprep.subr.mxu0 0.0
        %909 = vmatpush1.xpose.msra.mxu0 0.0
        %910 = vmatprep.subr.mxu0 0.0
        %911 = vmatpush1.xpose.msra.mxu0 0.0
        %912 = vmatprep.subr.mxu0 0.0
        %913 = vmatpush1.xpose.msra.mxu0 0.0
        %914 = vmatprep.subr.mxu0 0.0
        %915 = vmatpush1.xpose.msra.mxu0 0.0
        %916 = vmatprep.subr.mxu0 0.0
        %917 = vmatpush1.xpose.msra.mxu0 0.0
        %918 = vmatprep.subr.mxu0 0.0
        %919 = vmatpush1.xpose.msra.mxu0 0.0
        %920 = vmatprep.subr.mxu0 0.0
        %921 = vmatpush1.xpose.msra.mxu0 0.0
        %922 = vmatprep.subr.mxu0 0.0
        %923 = vmatpush1.xpose.msra.mxu0 0.0
        %924 = vmatprep.subr.mxu0 0.0
        %925 = vmatpush1.xpose.msra.mxu0 0.0
        %926 = vmatprep.subr.mxu0 0.0
        %927 = vmatpush1.xpose.msra.mxu0 0.0
        %928 = vmatprep.subr.mxu0 0.0
        %929 = vmatpush1.xpose.msra.mxu0 0.0
        %930 = vmatprep.subr.mxu0 0.0
        %931 = vmatpush1.xpose.msra.mxu0 0.0
        %932 = vmatprep.subr.mxu0 0.0
        %933 = vmatpush1.xpose.msra.mxu0 0.0
        %934 = vmatprep.subr.mxu0 0.0
        %935 = vmatpush1.xpose.msra.mxu0 0.0
        %936 = vmatprep.subr.mxu0 0.0
        %937 = vmatpush1.xpose.msra.mxu0 0.0
        %938 = vmatprep.subr.mxu0 0.0
        %939 = vmatpush1.xpose.msra.mxu0 0.0
        %940 = vmatprep.subr.mxu0 0.0
        %941 = vmatpush1.xpose.msra.mxu0 0.0
        %942 = vmatprep.subr.mxu0 0.0
        %943 = vmatpush1.xpose.msra.mxu0 0.0
        %944 = vmatprep.subr.mxu0 0.0
        %945 = vmatpush1.xpose.msra.mxu0 0.0
        %946 = vmatprep.subr.mxu0 0.0
        %947 = vmatpush1.xpose.msra.mxu0 0.0
        %948 = vmatprep.mubr.f32.mxu0 0.0
        %949 = vmatmul.mubr.f32.gmra.mrb[0].mxu0 %v882
        %v950 = vpop.f32.mrb[0].mxu0
        %v951 = vadd.f32 0.0, %v950
        %v952 = vpop.f32.mrb[0].mxu0
        %953 = vdwg.mxu0
        %v955 = vsel %vm367, %v495, 0
        %957 = vmatprep.subr.mxu0 0.0
        %958 = vmatpush1.xpose.msra.mxu0 %v955
        %959 = vmatprep.subr.mxu0 0.0
        %960 = vmatpush1.xpose.msra.mxu0 0.0
        %961 = vmatprep.subr.mxu0 0.0
        %962 = vmatpush1.xpose.msra.mxu0 0.0
        %963 = vmatprep.subr.mxu0 0.0
        %964 = vmatpush1.xpose.msra.mxu0 0.0
        %965 = vmatprep.subr.mxu0 0.0
        %966 = vmatpush1.xpose.msra.mxu0 0.0
        %967 = vmatprep.subr.mxu0 0.0
        %968 = vmatpush1.xpose.msra.mxu0 0.0
        %969 = vmatprep.subr.mxu0 0.0
        %970 = vmatpush1.xpose.msra.mxu0 0.0
        %971 = vmatprep.subr.mxu0 0.0
        %972 = vmatpush1.xpose.msra.mxu0 0.0
        %973 = vmatprep.subr.mxu0 0.0
        %974 = vmatpush1.xpose.msra.mxu0 0.0
        %975 = vmatprep.subr.mxu0 0.0
        %976 = vmatpush1.xpose.msra.mxu0 0.0
        %977 = vmatprep.subr.mxu0 0.0
        %978 = vmatpush1.xpose.msra.mxu0 0.0
        %979 = vmatprep.subr.mxu0 0.0
        %980 = vmatpush1.xpose.msra.mxu0 0.0
        %981 = vmatprep.subr.mxu0 0.0
        %982 = vmatpush1.xpose.msra.mxu0 0.0
        %983 = vmatprep.subr.mxu0 0.0
        %984 = vmatpush1.xpose.msra.mxu0 0.0
        %985 = vmatprep.subr.mxu0 0.0
        %986 = vmatpush1.xpose.msra.mxu0 0.0
        %987 = vmatprep.subr.mxu0 0.0
        %988 = vmatpush1.xpose.msra.mxu0 0.0
        %989 = vmatprep.subr.mxu0 0.0
        %990 = vmatpush1.xpose.msra.mxu0 0.0
        %991 = vmatprep.subr.mxu0 0.0
        %992 = vmatpush1.xpose.msra.mxu0 0.0
        %993 = vmatprep.subr.mxu0 0.0
        %994 = vmatpush1.xpose.msra.mxu0 0.0
        %995 = vmatprep.subr.mxu0 0.0
        %996 = vmatpush1.xpose.msra.mxu0 0.0
        %997 = vmatprep.subr.mxu0 0.0
        %998 = vmatpush1.xpose.msra.mxu0 0.0
        %999 = vmatprep.subr.mxu0 0.0
        %1000 = vmatpush1.xpose.msra.mxu0 0.0
        %1001 = vmatprep.subr.mxu0 0.0
        %1002 = vmatpush1.xpose.msra.mxu0 0.0
        %1003 = vmatprep.subr.mxu0 0.0
        %1004 = vmatpush1.xpose.msra.mxu0 0.0
        %1005 = vmatprep.subr.mxu0 0.0
        %1006 = vmatpush1.xpose.msra.mxu0 0.0
        %1007 = vmatprep.subr.mxu0 0.0
        %1008 = vmatpush1.xpose.msra.mxu0 0.0
        %1009 = vmatprep.subr.mxu0 0.0
        %1010 = vmatpush1.xpose.msra.mxu0 0.0
        %1011 = vmatprep.subr.mxu0 0.0
        %1012 = vmatpush1.xpose.msra.mxu0 0.0
        %1013 = vmatprep.subr.mxu0 0.0
        %1014 = vmatpush1.xpose.msra.mxu0 0.0
        %1015 = vmatprep.subr.mxu0 0.0
        %1016 = vmatpush1.xpose.msra.mxu0 0.0
        %1017 = vmatprep.subr.mxu0 0.0
        %1018 = vmatpush1.xpose.msra.mxu0 0.0
        %1019 = vmatprep.subr.mxu0 0.0
        %1020 = vmatpush1.xpose.msra.mxu0 0.0
        %1021 = vmatprep.mubr.f32.mxu0 0.0
        %1022 = vmatmul.mubr.f32.gmra.mrb[0].mxu0 %v955
        %v1023 = vpop.f32.mrb[0].mxu0
        %v1024 = vadd.f32 0.0, %v1023
        %v1025 = vpop.f32.mrb[0].mxu0
        %1026 = vdwg.mxu0
        %v1028 = vsel %vm367, %v500, 0
        %1030 = vmatprep.subr.mxu0 0.0
        %1031 = vmatpush1.xpose.msra.mxu0 %v1028
        %1032 = vmatprep.subr.mxu0 0.0
        %1033 = vmatpush1.xpose.msra.mxu0 0.0
        %1034 = vmatprep.subr.mxu0 0.0
        %1035 = vmatpush1.xpose.msra.mxu0 0.0
        %1036 = vmatprep.subr.mxu0 0.0
        %1037 = vmatpush1.xpose.msra.mxu0 0.0
        %1038 = vmatprep.subr.mxu0 0.0
        %1039 = vmatpush1.xpose.msra.mxu0 0.0
        %1040 = vmatprep.subr.mxu0 0.0
        %1041 = vmatpush1.xpose.msra.mxu0 0.0
        %1042 = vmatprep.subr.mxu0 0.0
        %1043 = vmatpush1.xpose.msra.mxu0 0.0
        %1044 = vmatprep.subr.mxu0 0.0
        %1045 = vmatpush1.xpose.msra.mxu0 0.0
        %1046 = vmatprep.subr.mxu0 0.0
        %1047 = vmatpush1.xpose.msra.mxu0 0.0
        %1048 = vmatprep.subr.mxu0 0.0
        %1049 = vmatpush1.xpose.msra.mxu0 0.0
        %1050 = vmatprep.subr.mxu0 0.0
        %1051 = vmatpush1.xpose.msra.mxu0 0.0
        %1052 = vmatprep.subr.mxu0 0.0
        %1053 = vmatpush1.xpose.msra.mxu0 0.0
        %1054 = vmatprep.subr.mxu0 0.0
        %1055 = vmatpush1.xpose.msra.mxu0 0.0
        %1056 = vmatprep.subr.mxu0 0.0
        %1057 = vmatpush1.xpose.msra.mxu0 0.0
        %1058 = vmatprep.subr.mxu0 0.0
        %1059 = vmatpush1.xpose.msra.mxu0 0.0
        %1060 = vmatprep.subr.mxu0 0.0
        %1061 = vmatpush1.xpose.msra.mxu0 0.0
        %1062 = vmatprep.subr.mxu0 0.0
        %1063 = vmatpush1.xpose.msra.mxu0 0.0
        %1064 = vmatprep.subr.mxu0 0.0
        %1065 = vmatpush1.xpose.msra.mxu0 0.0
        %1066 = vmatprep.subr.mxu0 0.0
        %1067 = vmatpush1.xpose.msra.mxu0 0.0
        %1068 = vmatprep.subr.mxu0 0.0
        %1069 = vmatpush1.xpose.msra.mxu0 0.0
        %1070 = vmatprep.subr.mxu0 0.0
        %1071 = vmatpush1.xpose.msra.mxu0 0.0
        %1072 = vmatprep.subr.mxu0 0.0
        %1073 = vmatpush1.xpose.msra.mxu0 0.0
        %1074 = vmatprep.subr.mxu0 0.0
        %1075 = vmatpush1.xpose.msra.mxu0 0.0
        %1076 = vmatprep.subr.mxu0 0.0
        %1077 = vmatpush1.xpose.msra.mxu0 0.0
        %1078 = vmatprep.subr.mxu0 0.0
        %1079 = vmatpush1.xpose.msra.mxu0 0.0
        %1080 = vmatprep.subr.mxu0 0.0
        %1081 = vmatpush1.xpose.msra.mxu0 0.0
        %1082 = vmatprep.subr.mxu0 0.0
        %1083 = vmatpush1.xpose.msra.mxu0 0.0
        %1084 = vmatprep.subr.mxu0 0.0
        %1085 = vmatpush1.xpose.msra.mxu0 0.0
        %1086 = vmatprep.subr.mxu0 0.0
        %1087 = vmatpush1.xpose.msra.mxu0 0.0
        %1088 = vmatprep.subr.mxu0 0.0
        %1089 = vmatpush1.xpose.msra.mxu0 0.0
        %1090 = vmatprep.subr.mxu0 0.0
        %1091 = vmatpush1.xpose.msra.mxu0 0.0
        %1092 = vmatprep.subr.mxu0 0.0
        %1093 = vmatpush1.xpose.msra.mxu0 0.0
        %1094 = vmatprep.mubr.f32.mxu0 0.0
        %1095 = vmatmul.mubr.f32.gmra.mrb[0].mxu0 %v1028
        %v1096 = vpop.f32.mrb[0].mxu0
        %v1097 = vadd.f32 0.0, %v1096
        %v1098 = vpop.f32.mrb[0].mxu0
        %1099 = vdwg.mxu0
        %v1100 = vsel %vm515, %v586, 0.0
        %v1101 = vsel %vm515, %v659, 0.0
        %v1102 = vsel %vm515, %v732, 0.0
        %v1103 = vsel %vm515, %v805, 0.0
        %v1104 = vsel %vm515, %v878, 0.0
        %v1105 = vsel %vm515, %v951, 0.0
        %v1106 = vsel %vm515, %v1024, 0.0
        %v1107 = vsel %vm515, %v1097, 0.0
        %vm1108 = vcmask 64512
        %v1109 = vsel %vm1108, %v1100, 0.0
        %1110 = vadd.xlane.f32.xlu0 %v1109
        %v1111 = vpop.xlane.xlu0 %1110
        %v1112 = vsel %vm1108, %v1101, 0.0
        %1113 = vadd.xlane.f32.xlu0 %v1112
        %v1114 = vpop.xlane.xlu0 %1113
        %v1115 = vsel %vm1108, %v1102, 0.0
        %1116 = vadd.xlane.f32.xlu0 %v1115
        %v1117 = vpop.xlane.xlu0 %1116
        %v1118 = vsel %vm1108, %v1103, 0.0
        %1119 = vadd.xlane.f32.xlu0 %v1118
        %v1120 = vpop.xlane.xlu0 %1119
        %v1121 = vsel %vm1108, %v1104, 0.0
        %1122 = vadd.xlane.f32.xlu0 %v1121
        %v1123 = vpop.xlane.xlu0 %1122
        %v1124 = vsel %vm1108, %v1105, 0.0
        %1125 = vadd.xlane.f32.xlu0 %v1124
        %v1126 = vpop.xlane.xlu0 %1125
        %v1127 = vsel %vm1108, %v1106, 0.0
        %1128 = vadd.xlane.f32.xlu0 %v1127
        %v1129 = vpop.xlane.xlu0 %1128
        %v1130 = vsel %vm1108, %v1107, 0.0
        %1131 = vadd.xlane.f32.xlu0 %v1130
        %v1132 = vpop.xlane.xlu0 %1131
        %v1133 = vrot.slane %v1109, 4
        %v1134 = vadd.f32 %v1109, %v1133
        %v1135 = vrot.slane %v1134, 2
        %v1136 = vadd.f32 %v1134, %v1135
        %v1137 = vrot.slane %v1136, 1
        %v1138 = vadd.f32 %v1136, %v1137
        %v1139 = vrot.slane %v1112, 4
        %v1140 = vadd.f32 %v1112, %v1139
        %v1141 = vrot.slane %v1140, 2
        %v1142 = vadd.f32 %v1140, %v1141
        %v1143 = vrot.slane %v1142, 1
        %v1144 = vadd.f32 %v1142, %v1143
        %v1145 = vrot.slane %v1115, 4
        %v1146 = vadd.f32 %v1115, %v1145
        %v1147 = vrot.slane %v1146, 2
        %v1148 = vadd.f32 %v1146, %v1147
        %v1149 = vrot.slane %v1148, 1
        %v1150 = vadd.f32 %v1148, %v1149
        %v1151 = vrot.slane %v1118, 4
        %v1152 = vadd.f32 %v1118, %v1151
        %v1153 = vrot.slane %v1152, 2
        %v1154 = vadd.f32 %v1152, %v1153
        %v1155 = vrot.slane %v1154, 1
        %v1156 = vadd.f32 %v1154, %v1155
        %v1157 = vrot.slane %v1121, 4
        %v1158 = vadd.f32 %v1121, %v1157
        %v1159 = vrot.slane %v1158, 2
        %v1160 = vadd.f32 %v1158, %v1159
        %v1161 = vrot.slane %v1160, 1
        %v1162 = vadd.f32 %v1160, %v1161
        %v1163 = vrot.slane %v1124, 4
        %v1164 = vadd.f32 %v1124, %v1163
        %v1165 = vrot.slane %v1164, 2
        %v1166 = vadd.f32 %v1164, %v1165
        %v1167 = vrot.slane %v1166, 1
        %v1168 = vadd.f32 %v1166, %v1167
        %v1169 = vrot.slane %v1127, 4
        %v1170 = vadd.f32 %v1127, %v1169
        %v1171 = vrot.slane %v1170, 2
        %v1172 = vadd.f32 %v1170, %v1171
        %v1173 = vrot.slane %v1172, 1
        %v1174 = vadd.f32 %v1172, %v1173
        %v1175 = vrot.slane %v1130, 4
        %v1176 = vadd.f32 %v1130, %v1175
        %v1177 = vrot.slane %v1176, 2
        %v1178 = vadd.f32 %v1176, %v1177
        %v1179 = vrot.slane %v1178, 1
        %v1180 = vadd.f32 %v1178, %v1179
        %v1181 = vadd.f32 %v1111, %v1138
        %v1182 = vadd.f32 %v1114, %v1144
        %v1183 = vadd.f32 %v1117, %v1150
        %v1184 = vadd.f32 %v1120, %v1156
        %v1185 = vadd.f32 %v1123, %v1162
        %v1186 = vadd.f32 %v1126, %v1168
        %v1187 = vadd.f32 %v1129, %v1174
        %v1188 = vadd.f32 %v1132, %v1180
        %v1189 = vmul.f32 %v586, 2.0
        %v1190 = vmul.f32 %v659, 2.0
        %v1191 = vmul.f32 %v732, 2.0
        %v1192 = vmul.f32 %v805, 2.0
        %v1193 = vmul.f32 %v878, 2.0
        %v1194 = vmul.f32 %v951, 2.0
        %v1195 = vmul.f32 %v1024, 2.0
        %v1196 = vmul.f32 %v1097, 2.0
        %v1197 = vsub.f32 %v1181, %v1189
        %v1198 = vsub.f32 %v1182, %v1190
        %v1199 = vsub.f32 %v1183, %v1191
        %v1200 = vsub.f32 %v1184, %v1192
        %v1201 = vsub.f32 %v1185, %v1193
        %v1202 = vsub.f32 %v1186, %v1194
        %v1203 = vsub.f32 %v1187, %v1195
        %v1204 = vsub.f32 %v1188, %v1196
        %v1205 = vmax.f32 %v1197, 0.0
        %v1206 = vmax.f32 %v1198, 0.0
        %v1207 = vmax.f32 %v1199, 0.0
        %v1208 = vmax.f32 %v1200, 0.0
        %v1209 = vmax.f32 %v1201, 0.0
        %v1210 = vmax.f32 %v1202, 0.0
        %v1211 = vmax.f32 %v1203, 0.0
        %v1212 = vmax.f32 %v1204, 0.0
        %1213 = vmatprep.subr.mxu0 0.0
        %1214 = vmatpush1.xpose.msra.mxu0 %v221
        %1215 = vmatprep.subr.mxu0 0.0
        %1216 = vmatpush1.xpose.msra.mxu0 0.0
        %1217 = vmatprep.subr.mxu0 0.0
        %1218 = vmatpush1.xpose.msra.mxu0 0.0
        %1219 = vmatprep.subr.mxu0 0.0
        %1220 = vmatpush1.xpose.msra.mxu0 0.0
        %1221 = vmatprep.subr.mxu0 0.0
        %1222 = vmatpush1.xpose.msra.mxu0 0.0
        %1223 = vmatprep.subr.mxu0 0.0
        %1224 = vmatpush1.xpose.msra.mxu0 0.0
        %1225 = vmatprep.subr.mxu0 0.0
        %1226 = vmatpush1.xpose.msra.mxu0 0.0
        %1227 = vmatprep.subr.mxu0 0.0
        %1228 = vmatpush1.xpose.msra.mxu0 0.0
        %1229 = vmatprep.subr.mxu0 0.0
        %1230 = vmatpush1.xpose.msra.mxu0 0.0
        %1231 = vmatprep.subr.mxu0 0.0
        %1232 = vmatpush1.xpose.msra.mxu0 0.0
        %1233 = vmatprep.subr.mxu0 0.0
        %1234 = vmatpush1.xpose.msra.mxu0 0.0
        %1235 = vmatprep.subr.mxu0 0.0
        %1236 = vmatpush1.xpose.msra.mxu0 0.0
        %1237 = vmatprep.subr.mxu0 0.0
        %1238 = vmatpush1.xpose.msra.mxu0 0.0
        %1239 = vmatprep.subr.mxu0 0.0
        %1240 = vmatpush1.xpose.msra.mxu0 0.0
        %1241 = vmatprep.subr.mxu0 0.0
        %1242 = vmatpush1.xpose.msra.mxu0 0.0
        %1243 = vmatprep.subr.mxu0 0.0
        %1244 = vmatpush1.xpose.msra.mxu0 0.0
        %1245 = vmatprep.subr.mxu0 0.0
        %1246 = vmatpush1.xpose.msra.mxu0 0.0
        %1247 = vmatprep.subr.mxu0 0.0
        %1248 = vmatpush1.xpose.msra.mxu0 0.0
        %1249 = vmatprep.subr.mxu0 0.0
        %1250 = vmatpush1.xpose.msra.mxu0 0.0
        %1251 = vmatprep.subr.mxu0 0.0
        %1252 = vmatpush1.xpose.msra.mxu0 0.0
        %1253 = vmatprep.subr.mxu0 0.0
        %1254 = vmatpush1.xpose.msra.mxu0 0.0
        %1255 = vmatprep.subr.mxu0 0.0
        %1256 = vmatpush1.xpose.msra.mxu0 0.0
        %1257 = vmatprep.subr.mxu0 0.0
        %1258 = vmatpush1.xpose.msra.mxu0 0.0
        %1259 = vmatprep.subr.mxu0 0.0
        %1260 = vmatpush1.xpose.msra.mxu0 0.0
        %1261 = vmatprep.subr.mxu0 0.0
        %1262 = vmatpush1.xpose.msra.mxu0 0.0
        %1263 = vmatprep.subr.mxu0 0.0
        %1264 = vmatpush1.xpose.msra.mxu0 0.0
        %1265 = vmatprep.subr.mxu0 0.0
        %1266 = vmatpush1.xpose.msra.mxu0 0.0
        %1267 = vmatprep.subr.mxu0 0.0
        %1268 = vmatpush1.xpose.msra.mxu0 0.0
        %1269 = vmatprep.subr.mxu0 0.0
        %1270 = vmatpush1.xpose.msra.mxu0 0.0
        %1271 = vmatprep.subr.mxu0 0.0
        %1272 = vmatpush1.xpose.msra.mxu0 0.0
        %1273 = vmatprep.subr.mxu0 0.0
        %1274 = vmatpush1.xpose.msra.mxu0 0.0
        %1275 = vmatprep.subr.mxu0 0.0
        %1276 = vmatpush1.xpose.msra.mxu0 0.0
        %1277 = vmatprep.mubr.f32.mxu0 0.0
        %1278 = vmatmul.mubr.f32.gmra.mrb[0].mxu0 %v221
        %v1279 = vpop.f32.mrb[0].mxu0
        %v1280 = vadd.f32 0.0, %v1279
        %v1281 = vpop.f32.mrb[0].mxu0
        %1282 = vdwg.mxu0
        %1283 = vmatprep.subr.mxu0 0.0
        %1284 = vmatpush1.xpose.msra.mxu0 %v224
        %1285 = vmatprep.subr.mxu0 0.0
        %1286 = vmatpush1.xpose.msra.mxu0 0.0
        %1287 = vmatprep.subr.mxu0 0.0
        %1288 = vmatpush1.xpose.msra.mxu0 0.0
        %1289 = vmatprep.subr.mxu0 0.0
        %1290 = vmatpush1.xpose.msra.mxu0 0.0
        %1291 = vmatprep.subr.mxu0 0.0
        %1292 = vmatpush1.xpose.msra.mxu0 0.0
        %1293 = vmatprep.subr.mxu0 0.0
        %1294 = vmatpush1.xpose.msra.mxu0 0.0
        %1295 = vmatprep.subr.mxu0 0.0
        %1296 = vmatpush1.xpose.msra.mxu0 0.0
        %1297 = vmatprep.subr.mxu0 0.0
        %1298 = vmatpush1.xpose.msra.mxu0 0.0
        %1299 = vmatprep.subr.mxu0 0.0
        %1300 = vmatpush1.xpose.msra.mxu0 0.0
        %1301 = vmatprep.subr.mxu0 0.0
        %1302 = vmatpush1.xpose.msra.mxu0 0.0
        %1303 = vmatprep.subr.mxu0 0.0
        %1304 = vmatpush1.xpose.msra.mxu0 0.0
        %1305 = vmatprep.subr.mxu0 0.0
        %1306 = vmatpush1.xpose.msra.mxu0 0.0
        %1307 = vmatprep.subr.mxu0 0.0
        %1308 = vmatpush1.xpose.msra.mxu0 0.0
        %1309 = vmatprep.subr.mxu0 0.0
        %1310 = vmatpush1.xpose.msra.mxu0 0.0
        %1311 = vmatprep.subr.mxu0 0.0
        %1312 = vmatpush1.xpose.msra.mxu0 0.0
        %1313 = vmatprep.subr.mxu0 0.0
        %1314 = vmatpush1.xpose.msra.mxu0 0.0
        %1315 = vmatprep.subr.mxu0 0.0
        %1316 = vmatpush1.xpose.msra.mxu0 0.0
        %1317 = vmatprep.subr.mxu0 0.0
        %1318 = vmatpush1.xpose.msra.mxu0 0.0
        %1319 = vmatprep.subr.mxu0 0.0
        %1320 = vmatpush1.xpose.msra.mxu0 0.0
        %1321 = vmatprep.subr.mxu0 0.0
        %1322 = vmatpush1.xpose.msra.mxu0 0.0
        %1323 = vmatprep.subr.mxu0 0.0
        %1324 = vmatpush1.xpose.msra.mxu0 0.0
        %1325 = vmatprep.subr.mxu0 0.0
        %1326 = vmatpush1.xpose.msra.mxu0 0.0
        %1327 = vmatprep.subr.mxu0 0.0
        %1328 = vmatpush1.xpose.msra.mxu0 0.0
        %1329 = vmatprep.subr.mxu0 0.0
        %1330 = vmatpush1.xpose.msra.mxu0 0.0
        %1331 = vmatprep.subr.mxu0 0.0
        %1332 = vmatpush1.xpose.msra.mxu0 0.0
        %1333 = vmatprep.subr.mxu0 0.0
        %1334 = vmatpush1.xpose.msra.mxu0 0.0
        %1335 = vmatprep.subr.mxu0 0.0
        %1336 = vmatpush1.xpose.msra.mxu0 0.0
        %1337 = vmatprep.subr.mxu0 0.0
        %1338 = vmatpush1.xpose.msra.mxu0 0.0
        %1339 = vmatprep.subr.mxu0 0.0
        %1340 = vmatpush1.xpose.msra.mxu0 0.0
        %1341 = vmatprep.subr.mxu0 0.0
        %1342 = vmatpush1.xpose.msra.mxu0 0.0
        %1343 = vmatprep.subr.mxu0 0.0
        %1344 = vmatpush1.xpose.msra.mxu0 0.0
        %1345 = vmatprep.subr.mxu0 0.0
        %1346 = vmatpush1.xpose.msra.mxu0 0.0
        %1347 = vmatprep.mubr.f32.mxu0 0.0
        %1348 = vmatmul.mubr.f32.gmra.mrb[0].mxu0 %v224
        %v1349 = vpop.f32.mrb[0].mxu0
        %v1350 = vadd.f32 0.0, %v1349
        %v1351 = vpop.f32.mrb[0].mxu0
        %1352 = vdwg.mxu0
        %1353 = vmatprep.subr.mxu0 0.0
        %1354 = vmatpush1.xpose.msra.mxu0 %v227
        %1355 = vmatprep.subr.mxu0 0.0
        %1356 = vmatpush1.xpose.msra.mxu0 0.0
        %1357 = vmatprep.subr.mxu0 0.0
        %1358 = vmatpush1.xpose.msra.mxu0 0.0
        %1359 = vmatprep.subr.mxu0 0.0
        %1360 = vmatpush1.xpose.msra.mxu0 0.0
        %1361 = vmatprep.subr.mxu0 0.0
        %1362 = vmatpush1.xpose.msra.mxu0 0.0
        %1363 = vmatprep.subr.mxu0 0.0
        %1364 = vmatpush1.xpose.msra.mxu0 0.0
        %1365 = vmatprep.subr.mxu0 0.0
        %1366 = vmatpush1.xpose.msra.mxu0 0.0
        %1367 = vmatprep.subr.mxu0 0.0
        %1368 = vmatpush1.xpose.msra.mxu0 0.0
        %1369 = vmatprep.subr.mxu0 0.0
        %1370 = vmatpush1.xpose.msra.mxu0 0.0
        %1371 = vmatprep.subr.mxu0 0.0
        %1372 = vmatpush1.xpose.msra.mxu0 0.0
        %1373 = vmatprep.subr.mxu0 0.0
        %1374 = vmatpush1.xpose.msra.mxu0 0.0
        %1375 = vmatprep.subr.mxu0 0.0
        %1376 = vmatpush1.xpose.msra.mxu0 0.0
        %1377 = vmatprep.subr.mxu0 0.0
        %1378 = vmatpush1.xpose.msra.mxu0 0.0
        %1379 = vmatprep.subr.mxu0 0.0
        %1380 = vmatpush1.xpose.msra.mxu0 0.0
        %1381 = vmatprep.subr.mxu0 0.0
        %1382 = vmatpush1.xpose.msra.mxu0 0.0
        %1383 = vmatprep.subr.mxu0 0.0
        %1384 = vmatpush1.xpose.msra.mxu0 0.0
        %1385 = vmatprep.subr.mxu0 0.0
        %1386 = vmatpush1.xpose.msra.mxu0 0.0
        %1387 = vmatprep.subr.mxu0 0.0
        %1388 = vmatpush1.xpose.msra.mxu0 0.0
        %1389 = vmatprep.subr.mxu0 0.0
        %1390 = vmatpush1.xpose.msra.mxu0 0.0
        %1391 = vmatprep.subr.mxu0 0.0
        %1392 = vmatpush1.xpose.msra.mxu0 0.0
        %1393 = vmatprep.subr.mxu0 0.0
        %1394 = vmatpush1.xpose.msra.mxu0 0.0
        %1395 = vmatprep.subr.mxu0 0.0
        %1396 = vmatpush1.xpose.msra.mxu0 0.0
        %1397 = vmatprep.subr.mxu0 0.0
        %1398 = vmatpush1.xpose.msra.mxu0 0.0
        %1399 = vmatprep.subr.mxu0 0.0
        %1400 = vmatpush1.xpose.msra.mxu0 0.0
        %1401 = vmatprep.subr.mxu0 0.0
        %1402 = vmatpush1.xpose.msra.mxu0 0.0
        %1403 = vmatprep.subr.mxu0 0.0
        %1404 = vmatpush1.xpose.msra.mxu0 0.0
        %1405 = vmatprep.subr.mxu0 0.0
        %1406 = vmatpush1.xpose.msra.mxu0 0.0
        %1407 = vmatprep.subr.mxu0 0.0
        %1408 = vmatpush1.xpose.msra.mxu0 0.0
        %1409 = vmatprep.subr.mxu0 0.0
        %1410 = vmatpush1.xpose.msra.mxu0 0.0
        %1411 = vmatprep.subr.mxu0 0.0
        %1412 = vmatpush1.xpose.msra.mxu0 0.0
        %1413 = vmatprep.subr.mxu0 0.0
        %1414 = vmatpush1.xpose.msra.mxu0 0.0
        %1415 = vmatprep.subr.mxu0 0.0
        %1416 = vmatpush1.xpose.msra.mxu0 0.0
        %1417 = vmatprep.mubr.f32.mxu0 0.0
        %1418 = vmatmul.mubr.f32.gmra.mrb[0].mxu0 %v227
        %v1419 = vpop.f32.mrb[0].mxu0
        %v1420 = vadd.f32 0.0, %v1419
        %v1421 = vpop.f32.mrb[0].mxu0
        %1422 = vdwg.mxu0
        %1423 = vmatprep.subr.mxu0 0.0
        %1424 = vmatpush1.xpose.msra.mxu0 %v230
        %1425 = vmatprep.subr.mxu0 0.0
        %1426 = vmatpush1.xpose.msra.mxu0 0.0
        %1427 = vmatprep.subr.mxu0 0.0
        %1428 = vmatpush1.xpose.msra.mxu0 0.0
        %1429 = vmatprep.subr.mxu0 0.0
        %1430 = vmatpush1.xpose.msra.mxu0 0.0
        %1431 = vmatprep.subr.mxu0 0.0
        %1432 = vmatpush1.xpose.msra.mxu0 0.0
        %1433 = vmatprep.subr.mxu0 0.0
        %1434 = vmatpush1.xpose.msra.mxu0 0.0
        %1435 = vmatprep.subr.mxu0 0.0
        %1436 = vmatpush1.xpose.msra.mxu0 0.0
        %1437 = vmatprep.subr.mxu0 0.0
        %1438 = vmatpush1.xpose.msra.mxu0 0.0
        %1439 = vmatprep.subr.mxu0 0.0
        %1440 = vmatpush1.xpose.msra.mxu0 0.0
        %1441 = vmatprep.subr.mxu0 0.0
        %1442 = vmatpush1.xpose.msra.mxu0 0.0
        %1443 = vmatprep.subr.mxu0 0.0
        %1444 = vmatpush1.xpose.msra.mxu0 0.0
        %1445 = vmatprep.subr.mxu0 0.0
        %1446 = vmatpush1.xpose.msra.mxu0 0.0
        %1447 = vmatprep.subr.mxu0 0.0
        %1448 = vmatpush1.xpose.msra.mxu0 0.0
        %1449 = vmatprep.subr.mxu0 0.0
        %1450 = vmatpush1.xpose.msra.mxu0 0.0
        %1451 = vmatprep.subr.mxu0 0.0
        %1452 = vmatpush1.xpose.msra.mxu0 0.0
        %1453 = vmatprep.subr.mxu0 0.0
        %1454 = vmatpush1.xpose.msra.mxu0 0.0
        %1455 = vmatprep.subr.mxu0 0.0
        %1456 = vmatpush1.xpose.msra.mxu0 0.0
        %1457 = vmatprep.subr.mxu0 0.0
        %1458 = vmatpush1.xpose.msra.mxu0 0.0
        %1459 = vmatprep.subr.mxu0 0.0
        %1460 = vmatpush1.xpose.msra.mxu0 0.0
        %1461 = vmatprep.subr.mxu0 0.0
        %1462 = vmatpush1.xpose.msra.mxu0 0.0
        %1463 = vmatprep.subr.mxu0 0.0
        %1464 = vmatpush1.xpose.msra.mxu0 0.0
        %1465 = vmatprep.subr.mxu0 0.0
        %1466 = vmatpush1.xpose.msra.mxu0 0.0
        %1467 = vmatprep.subr.mxu0 0.0
        %1468 = vmatpush1.xpose.msra.mxu0 0.0
        %1469 = vmatprep.subr.mxu0 0.0
        %1470 = vmatpush1.xpose.msra.mxu0 0.0
        %1471 = vmatprep.subr.mxu0 0.0
        %1472 = vmatpush1.xpose.msra.mxu0 0.0
        %1473 = vmatprep.subr.mxu0 0.0
        %1474 = vmatpush1.xpose.msra.mxu0 0.0
        %1475 = vmatprep.subr.mxu0 0.0
        %1476 = vmatpush1.xpose.msra.mxu0 0.0
        %1477 = vmatprep.subr.mxu0 0.0
        %1478 = vmatpush1.xpose.msra.mxu0 0.0
        %1479 = vmatprep.subr.mxu0 0.0
        %1480 = vmatpush1.xpose.msra.mxu0 0.0
        %1481 = vmatprep.subr.mxu0 0.0
        %1482 = vmatpush1.xpose.msra.mxu0 0.0
        %1483 = vmatprep.subr.mxu0 0.0
        %1484 = vmatpush1.xpose.msra.mxu0 0.0
        %1485 = vmatprep.subr.mxu0 0.0
        %1486 = vmatpush1.xpose.msra.mxu0 0.0
        %1487 = vmatprep.mubr.f32.mxu0 0.0
        %1488 = vmatmul.mubr.f32.gmra.mrb[0].mxu0 %v230
        %v1489 = vpop.f32.mrb[0].mxu0
        %v1490 = vadd.f32 0.0, %v1489
        %v1491 = vpop.f32.mrb[0].mxu0
        %1492 = vdwg.mxu0
        %1493 = vmatprep.subr.mxu0 0.0
        %1494 = vmatpush1.xpose.msra.mxu0 %v233
        %1495 = vmatprep.subr.mxu0 0.0
        %1496 = vmatpush1.xpose.msra.mxu0 0.0
        %1497 = vmatprep.subr.mxu0 0.0
        %1498 = vmatpush1.xpose.msra.mxu0 0.0
        %1499 = vmatprep.subr.mxu0 0.0
        %1500 = vmatpush1.xpose.msra.mxu0 0.0
        %1501 = vmatprep.subr.mxu0 0.0
        %1502 = vmatpush1.xpose.msra.mxu0 0.0
        %1503 = vmatprep.subr.mxu0 0.0
        %1504 = vmatpush1.xpose.msra.mxu0 0.0
        %1505 = vmatprep.subr.mxu0 0.0
        %1506 = vmatpush1.xpose.msra.mxu0 0.0
        %1507 = vmatprep.subr.mxu0 0.0
        %1508 = vmatpush1.xpose.msra.mxu0 0.0
        %1509 = vmatprep.subr.mxu0 0.0
        %1510 = vmatpush1.xpose.msra.mxu0 0.0
        %1511 = vmatprep.subr.mxu0 0.0
        %1512 = vmatpush1.xpose.msra.mxu0 0.0
        %1513 = vmatprep.subr.mxu0 0.0
        %1514 = vmatpush1.xpose.msra.mxu0 0.0
        %1515 = vmatprep.subr.mxu0 0.0
        %1516 = vmatpush1.xpose.msra.mxu0 0.0
        %1517 = vmatprep.subr.mxu0 0.0
        %1518 = vmatpush1.xpose.msra.mxu0 0.0
        %1519 = vmatprep.subr.mxu0 0.0
        %1520 = vmatpush1.xpose.msra.mxu0 0.0
        %1521 = vmatprep.subr.mxu0 0.0
        %1522 = vmatpush1.xpose.msra.mxu0 0.0
        %1523 = vmatprep.subr.mxu0 0.0
        %1524 = vmatpush1.xpose.msra.mxu0 0.0
        %1525 = vmatprep.subr.mxu0 0.0
        %1526 = vmatpush1.xpose.msra.mxu0 0.0
        %1527 = vmatprep.subr.mxu0 0.0
        %1528 = vmatpush1.xpose.msra.mxu0 0.0
        %1529 = vmatprep.subr.mxu0 0.0
        %1530 = vmatpush1.xpose.msra.mxu0 0.0
        %1531 = vmatprep.subr.mxu0 0.0
        %1532 = vmatpush1.xpose.msra.mxu0 0.0
        %1533 = vmatprep.subr.mxu0 0.0
        %1534 = vmatpush1.xpose.msra.mxu0 0.0
        %1535 = vmatprep.subr.mxu0 0.0
        %1536 = vmatpush1.xpose.msra.mxu0 0.0
        %1537 = vmatprep.subr.mxu0 0.0
        %1538 = vmatpush1.xpose.msra.mxu0 0.0
        %1539 = vmatprep.subr.mxu0 0.0
        %1540 = vmatpush1.xpose.msra.mxu0 0.0
        %1541 = vmatprep.subr.mxu0 0.0
        %1542 = vmatpush1.xpose.msra.mxu0 0.0
        %1543 = vmatprep.subr.mxu0 0.0
        %1544 = vmatpush1.xpose.msra.mxu0 0.0
        %1545 = vmatprep.subr.mxu0 0.0
        %1546 = vmatpush1.xpose.msra.mxu0 0.0
        %1547 = vmatprep.subr.mxu0 0.0
        %1548 = vmatpush1.xpose.msra.mxu0 0.0
        %1549 = vmatprep.subr.mxu0 0.0
        %1550 = vmatpush1.xpose.msra.mxu0 0.0
        %1551 = vmatprep.subr.mxu0 0.0
        %1552 = vmatpush1.xpose.msra.mxu0 0.0
        %1553 = vmatprep.subr.mxu0 0.0
        %1554 = vmatpush1.xpose.msra.mxu0 0.0
        %1555 = vmatprep.subr.mxu0 0.0
        %1556 = vmatpush1.xpose.msra.mxu0 0.0
        %1557 = vmatprep.mubr.f32.mxu0 0.0
        %1558 = vmatmul.mubr.f32.gmra.mrb[0].mxu0 %v233
        %v1559 = vpop.f32.mrb[0].mxu0
        %v1560 = vadd.f32 0.0, %v1559
        %v1561 = vpop.f32.mrb[0].mxu0
        %1562 = vdwg.mxu0
        %1563 = vmatprep.subr.mxu0 0.0
        %1564 = vmatpush1.xpose.msra.mxu0 %v236
        %1565 = vmatprep.subr.mxu0 0.0
        %1566 = vmatpush1.xpose.msra.mxu0 0.0
        %1567 = vmatprep.subr.mxu0 0.0
        %1568 = vmatpush1.xpose.msra.mxu0 0.0
        %1569 = vmatprep.subr.mxu0 0.0
        %1570 = vmatpush1.xpose.msra.mxu0 0.0
        %1571 = vmatprep.subr.mxu0 0.0
        %1572 = vmatpush1.xpose.msra.mxu0 0.0
        %1573 = vmatprep.subr.mxu0 0.0
        %1574 = vmatpush1.xpose.msra.mxu0 0.0
        %1575 = vmatprep.subr.mxu0 0.0
        %1576 = vmatpush1.xpose.msra.mxu0 0.0
        %1577 = vmatprep.subr.mxu0 0.0
        %1578 = vmatpush1.xpose.msra.mxu0 0.0
        %1579 = vmatprep.subr.mxu0 0.0
        %1580 = vmatpush1.xpose.msra.mxu0 0.0
        %1581 = vmatprep.subr.mxu0 0.0
        %1582 = vmatpush1.xpose.msra.mxu0 0.0
        %1583 = vmatprep.subr.mxu0 0.0
        %1584 = vmatpush1.xpose.msra.mxu0 0.0
        %1585 = vmatprep.subr.mxu0 0.0
        %1586 = vmatpush1.xpose.msra.mxu0 0.0
        %1587 = vmatprep.subr.mxu0 0.0
        %1588 = vmatpush1.xpose.msra.mxu0 0.0
        %1589 = vmatprep.subr.mxu0 0.0
        %1590 = vmatpush1.xpose.msra.mxu0 0.0
        %1591 = vmatprep.subr.mxu0 0.0
        %1592 = vmatpush1.xpose.msra.mxu0 0.0
        %1593 = vmatprep.subr.mxu0 0.0
        %1594 = vmatpush1.xpose.msra.mxu0 0.0
        %1595 = vmatprep.subr.mxu0 0.0
        %1596 = vmatpush1.xpose.msra.mxu0 0.0
        %1597 = vmatprep.subr.mxu0 0.0
        %1598 = vmatpush1.xpose.msra.mxu0 0.0
        %1599 = vmatprep.subr.mxu0 0.0
        %1600 = vmatpush1.xpose.msra.mxu0 0.0
        %1601 = vmatprep.subr.mxu0 0.0
        %1602 = vmatpush1.xpose.msra.mxu0 0.0
        %1603 = vmatprep.subr.mxu0 0.0
        %1604 = vmatpush1.xpose.msra.mxu0 0.0
        %1605 = vmatprep.subr.mxu0 0.0
        %1606 = vmatpush1.xpose.msra.mxu0 0.0
        %1607 = vmatprep.subr.mxu0 0.0
        %1608 = vmatpush1.xpose.msra.mxu0 0.0
        %1609 = vmatprep.subr.mxu0 0.0
        %1610 = vmatpush1.xpose.msra.mxu0 0.0
        %1611 = vmatprep.subr.mxu0 0.0
        %1612 = vmatpush1.xpose.msra.mxu0 0.0
        %1613 = vmatprep.subr.mxu0 0.0
        %1614 = vmatpush1.xpose.msra.mxu0 0.0
        %1615 = vmatprep.subr.mxu0 0.0
        %1616 = vmatpush1.xpose.msra.mxu0 0.0
        %1617 = vmatprep.subr.mxu0 0.0
        %1618 = vmatpush1.xpose.msra.mxu0 0.0
        %1619 = vmatprep.subr.mxu0 0.0
        %1620 = vmatpush1.xpose.msra.mxu0 0.0
        %1621 = vmatprep.subr.mxu0 0.0
        %1622 = vmatpush1.xpose.msra.mxu0 0.0
        %1623 = vmatprep.subr.mxu0 0.0
        %1624 = vmatpush1.xpose.msra.mxu0 0.0
        %1625 = vmatprep.subr.mxu0 0.0
        %1626 = vmatpush1.xpose.msra.mxu0 0.0
        %1627 = vmatprep.mubr.f32.mxu0 0.0
        %1628 = vmatmul.mubr.f32.gmra.mrb[0].mxu0 %v236
        %v1629 = vpop.f32.mrb[0].mxu0
        %v1630 = vadd.f32 0.0, %v1629
        %v1631 = vpop.f32.mrb[0].mxu0
        %1632 = vdwg.mxu0
        %1633 = vmatprep.subr.mxu0 0.0
        %1634 = vmatpush1.xpose.msra.mxu0 %v239
        %1635 = vmatprep.subr.mxu0 0.0
        %1636 = vmatpush1.xpose.msra.mxu0 0.0
        %1637 = vmatprep.subr.mxu0 0.0
        %1638 = vmatpush1.xpose.msra.mxu0 0.0
        %1639 = vmatprep.subr.mxu0 0.0
        %1640 = vmatpush1.xpose.msra.mxu0 0.0
        %1641 = vmatprep.subr.mxu0 0.0
        %1642 = vmatpush1.xpose.msra.mxu0 0.0
        %1643 = vmatprep.subr.mxu0 0.0
        %1644 = vmatpush1.xpose.msra.mxu0 0.0
        %1645 = vmatprep.subr.mxu0 0.0
        %1646 = vmatpush1.xpose.msra.mxu0 0.0
        %1647 = vmatprep.subr.mxu0 0.0
        %1648 = vmatpush1.xpose.msra.mxu0 0.0
        %1649 = vmatprep.subr.mxu0 0.0
        %1650 = vmatpush1.xpose.msra.mxu0 0.0
        %1651 = vmatprep.subr.mxu0 0.0
        %1652 = vmatpush1.xpose.msra.mxu0 0.0
        %1653 = vmatprep.subr.mxu0 0.0
        %1654 = vmatpush1.xpose.msra.mxu0 0.0
        %1655 = vmatprep.subr.mxu0 0.0
        %1656 = vmatpush1.xpose.msra.mxu0 0.0
        %1657 = vmatprep.subr.mxu0 0.0
        %1658 = vmatpush1.xpose.msra.mxu0 0.0
        %1659 = vmatprep.subr.mxu0 0.0
        %1660 = vmatpush1.xpose.msra.mxu0 0.0
        %1661 = vmatprep.subr.mxu0 0.0
        %1662 = vmatpush1.xpose.msra.mxu0 0.0
        %1663 = vmatprep.subr.mxu0 0.0
        %1664 = vmatpush1.xpose.msra.mxu0 0.0
        %1665 = vmatprep.subr.mxu0 0.0
        %1666 = vmatpush1.xpose.msra.mxu0 0.0
        %1667 = vmatprep.subr.mxu0 0.0
        %1668 = vmatpush1.xpose.msra.mxu0 0.0
        %1669 = vmatprep.subr.mxu0 0.0
        %1670 = vmatpush1.xpose.msra.mxu0 0.0
        %1671 = vmatprep.subr.mxu0 0.0
        %1672 = vmatpush1.xpose.msra.mxu0 0.0
        %1673 = vmatprep.subr.mxu0 0.0
        %1674 = vmatpush1.xpose.msra.mxu0 0.0
        %1675 = vmatprep.subr.mxu0 0.0
        %1676 = vmatpush1.xpose.msra.mxu0 0.0
        %1677 = vmatprep.subr.mxu0 0.0
        %1678 = vmatpush1.xpose.msra.mxu0 0.0
        %1679 = vmatprep.subr.mxu0 0.0
        %1680 = vmatpush1.xpose.msra.mxu0 0.0
        %1681 = vmatprep.subr.mxu0 0.0
        %1682 = vmatpush1.xpose.msra.mxu0 0.0
        %1683 = vmatprep.subr.mxu0 0.0
        %1684 = vmatpush1.xpose.msra.mxu0 0.0
        %1685 = vmatprep.subr.mxu0 0.0
        %1686 = vmatpush1.xpose.msra.mxu0 0.0
        %1687 = vmatprep.subr.mxu0 0.0
        %1688 = vmatpush1.xpose.msra.mxu0 0.0
        %1689 = vmatprep.subr.mxu0 0.0
        %1690 = vmatpush1.xpose.msra.mxu0 0.0
        %1691 = vmatprep.subr.mxu0 0.0
        %1692 = vmatpush1.xpose.msra.mxu0 0.0
        %1693 = vmatprep.subr.mxu0 0.0
        %1694 = vmatpush1.xpose.msra.mxu0 0.0
        %1695 = vmatprep.subr.mxu0 0.0
        %1696 = vmatpush1.xpose.msra.mxu0 0.0
        %1697 = vmatprep.mubr.f32.mxu0 0.0
        %1698 = vmatmul.mubr.f32.gmra.mrb[0].mxu0 %v239
        %v1699 = vpop.f32.mrb[0].mxu0
        %v1700 = vadd.f32 0.0, %v1699
        %v1701 = vpop.f32.mrb[0].mxu0
        %1702 = vdwg.mxu0
        %1703 = vmatprep.subr.mxu0 0.0
        %1704 = vmatpush1.xpose.msra.mxu0 %v242
        %1705 = vmatprep.subr.mxu0 0.0
        %1706 = vmatpush1.xpose.msra.mxu0 0.0
        %1707 = vmatprep.subr.mxu0 0.0
        %1708 = vmatpush1.xpose.msra.mxu0 0.0
        %1709 = vmatprep.subr.mxu0 0.0
        %1710 = vmatpush1.xpose.msra.mxu0 0.0
        %1711 = vmatprep.subr.mxu0 0.0
        %1712 = vmatpush1.xpose.msra.mxu0 0.0
        %1713 = vmatprep.subr.mxu0 0.0
        %1714 = vmatpush1.xpose.msra.mxu0 0.0
        %1715 = vmatprep.subr.mxu0 0.0
        %1716 = vmatpush1.xpose.msra.mxu0 0.0
        %1717 = vmatprep.subr.mxu0 0.0
        %1718 = vmatpush1.xpose.msra.mxu0 0.0
        %1719 = vmatprep.subr.mxu0 0.0
        %1720 = vmatpush1.xpose.msra.mxu0 0.0
        %1721 = vmatprep.subr.mxu0 0.0
        %1722 = vmatpush1.xpose.msra.mxu0 0.0
        %1723 = vmatprep.subr.mxu0 0.0
        %1724 = vmatpush1.xpose.msra.mxu0 0.0
        %1725 = vmatprep.subr.mxu0 0.0
        %1726 = vmatpush1.xpose.msra.mxu0 0.0
        %1727 = vmatprep.subr.mxu0 0.0
        %1728 = vmatpush1.xpose.msra.mxu0 0.0
        %1729 = vmatprep.subr.mxu0 0.0
        %1730 = vmatpush1.xpose.msra.mxu0 0.0
        %1731 = vmatprep.subr.mxu0 0.0
        %1732 = vmatpush1.xpose.msra.mxu0 0.0
        %1733 = vmatprep.subr.mxu0 0.0
        %1734 = vmatpush1.xpose.msra.mxu0 0.0
        %1735 = vmatprep.subr.mxu0 0.0
        %1736 = vmatpush1.xpose.msra.mxu0 0.0
        %1737 = vmatprep.subr.mxu0 0.0
        %1738 = vmatpush1.xpose.msra.mxu0 0.0
        %1739 = vmatprep.subr.mxu0 0.0
        %1740 = vmatpush1.xpose.msra.mxu0 0.0
        %1741 = vmatprep.subr.mxu0 0.0
        %1742 = vmatpush1.xpose.msra.mxu0 0.0
        %1743 = vmatprep.subr.mxu0 0.0
        %1744 = vmatpush1.xpose.msra.mxu0 0.0
        %1745 = vmatprep.subr.mxu0 0.0
        %1746 = vmatpush1.xpose.msra.mxu0 0.0
        %1747 = vmatprep.subr.mxu0 0.0
        %1748 = vmatpush1.xpose.msra.mxu0 0.0
        %1749 = vmatprep.subr.mxu0 0.0
        %1750 = vmatpush1.xpose.msra.mxu0 0.0
        %1751 = vmatprep.subr.mxu0 0.0
        %1752 = vmatpush1.xpose.msra.mxu0 0.0
        %1753 = vmatprep.subr.mxu0 0.0
        %1754 = vmatpush1.xpose.msra.mxu0 0.0
        %1755 = vmatprep.subr.mxu0 0.0
        %1756 = vmatpush1.xpose.msra.mxu0 0.0
        %1757 = vmatprep.subr.mxu0 0.0
        %1758 = vmatpush1.xpose.msra.mxu0 0.0
        %1759 = vmatprep.subr.mxu0 0.0
        %1760 = vmatpush1.xpose.msra.mxu0 0.0
        %1761 = vmatprep.subr.mxu0 0.0
        %1762 = vmatpush1.xpose.msra.mxu0 0.0
        %1763 = vmatprep.subr.mxu0 0.0
        %1764 = vmatpush1.xpose.msra.mxu0 0.0
        %1765 = vmatprep.subr.mxu0 0.0
        %1766 = vmatpush1.xpose.msra.mxu0 0.0
        %1767 = vmatprep.mubr.f32.mxu0 0.0
        %1768 = vmatmul.mubr.f32.gmra.mrb[0].mxu0 %v242
        %v1769 = vpop.f32.mrb[0].mxu0
        %v1770 = vadd.f32 0.0, %v1769
        %v1771 = vpop.f32.mrb[0].mxu0
        %1772 = vdwg.mxu0
        %v1773 = vsel %vm515, %v1280, 0.0
        %v1774 = vsel %vm515, %v1350, 0.0
        %v1775 = vsel %vm515, %v1420, 0.0
        %v1776 = vsel %vm515, %v1490, 0.0
        %v1777 = vsel %vm515, %v1560, 0.0
        %v1778 = vsel %vm515, %v1630, 0.0
        %v1779 = vsel %vm515, %v1700, 0.0
        %v1780 = vsel %vm515, %v1770, 0.0
        %v1781 = vsel %vm1108, %v1773, 0.0
        %1782 = vadd.xlane.f32.xlu0 %v1781
        %v1783 = vpop.xlane.xlu0 %1782
        %v1784 = vsel %vm1108, %v1774, 0.0
        %1785 = vadd.xlane.f32.xlu0 %v1784
        %v1786 = vpop.xlane.xlu0 %1785
        %v1787 = vsel %vm1108, %v1775, 0.0
        %1788 = vadd.xlane.f32.xlu0 %v1787
        %v1789 = vpop.xlane.xlu0 %1788
        %v1790 = vsel %vm1108, %v1776, 0.0
        %1791 = vadd.xlane.f32.xlu0 %v1790
        %v1792 = vpop.xlane.xlu0 %1791
        %v1793 = vsel %vm1108, %v1777, 0.0
        %1794 = vadd.xlane.f32.xlu0 %v1793
        %v1795 = vpop.xlane.xlu0 %1794
        %v1796 = vsel %vm1108, %v1778, 0.0
        %1797 = vadd.xlane.f32.xlu0 %v1796
        %v1798 = vpop.xlane.xlu0 %1797
        %v1799 = vsel %vm1108, %v1779, 0.0
        %1800 = vadd.xlane.f32.xlu0 %v1799
        %v1801 = vpop.xlane.xlu0 %1800
        %v1802 = vsel %vm1108, %v1780, 0.0
        %1803 = vadd.xlane.f32.xlu0 %v1802
        %v1804 = vpop.xlane.xlu0 %1803
        %v1805 = vrot.slane %v1781, 4
        %v1806 = vadd.f32 %v1781, %v1805
        %v1807 = vrot.slane %v1806, 2
        %v1808 = vadd.f32 %v1806, %v1807
        %v1809 = vrot.slane %v1808, 1
        %v1810 = vadd.f32 %v1808, %v1809
        %v1811 = vrot.slane %v1784, 4
        %v1812 = vadd.f32 %v1784, %v1811
        %v1813 = vrot.slane %v1812, 2
        %v1814 = vadd.f32 %v1812, %v1813
        %v1815 = vrot.slane %v1814, 1
        %v1816 = vadd.f32 %v1814, %v1815
        %v1817 = vrot.slane %v1787, 4
        %v1818 = vadd.f32 %v1787, %v1817
        %v1819 = vrot.slane %v1818, 2
        %v1820 = vadd.f32 %v1818, %v1819
        %v1821 = vrot.slane %v1820, 1
        %v1822 = vadd.f32 %v1820, %v1821
        %v1823 = vrot.slane %v1790, 4
        %v1824 = vadd.f32 %v1790, %v1823
        %v1825 = vrot.slane %v1824, 2
        %v1826 = vadd.f32 %v1824, %v1825
        %v1827 = vrot.slane %v1826, 1
        %v1828 = vadd.f32 %v1826, %v1827
        %v1829 = vrot.slane %v1793, 4
        %v1830 = vadd.f32 %v1793, %v1829
        %v1831 = vrot.slane %v1830, 2
        %v1832 = vadd.f32 %v1830, %v1831
        %v1833 = vrot.slane %v1832, 1
        %v1834 = vadd.f32 %v1832, %v1833
        %v1835 = vrot.slane %v1796, 4
        %v1836 = vadd.f32 %v1796, %v1835
        %v1837 = vrot.slane %v1836, 2
        %v1838 = vadd.f32 %v1836, %v1837
        %v1839 = vrot.slane %v1838, 1
        %v1840 = vadd.f32 %v1838, %v1839
        %v1841 = vrot.slane %v1799, 4
        %v1842 = vadd.f32 %v1799, %v1841
        %v1843 = vrot.slane %v1842, 2
        %v1844 = vadd.f32 %v1842, %v1843
        %v1845 = vrot.slane %v1844, 1
        %v1846 = vadd.f32 %v1844, %v1845
        %v1847 = vrot.slane %v1802, 4
        %v1848 = vadd.f32 %v1802, %v1847
        %v1849 = vrot.slane %v1848, 2
        %v1850 = vadd.f32 %v1848, %v1849
        %v1851 = vrot.slane %v1850, 1
        %v1852 = vadd.f32 %v1850, %v1851
        %v1853 = vadd.f32 %v1783, %v1810
        %v1854 = vadd.f32 %v1786, %v1816
        %v1855 = vadd.f32 %v1789, %v1822
        %v1856 = vadd.f32 %v1792, %v1828
        %v1857 = vadd.f32 %v1795, %v1834
        %v1858 = vadd.f32 %v1798, %v1840
        %v1859 = vadd.f32 %v1801, %v1846
        %v1860 = vadd.f32 %v1804, %v1852
        %v1861 = vmul.f32 %v1280, 2.0
        %v1862 = vmul.f32 %v1350, 2.0
        %v1863 = vmul.f32 %v1420, 2.0
        %v1864 = vmul.f32 %v1490, 2.0
        %v1865 = vmul.f32 %v1560, 2.0
        %v1866 = vmul.f32 %v1630, 2.0
        %v1867 = vmul.f32 %v1700, 2.0
        %v1868 = vmul.f32 %v1770, 2.0
        %v1869 = vsub.f32 %v1853, %v1861
        %v1870 = vsub.f32 %v1854, %v1862
        %v1871 = vsub.f32 %v1855, %v1863
        %v1872 = vsub.f32 %v1856, %v1864
        %v1873 = vsub.f32 %v1857, %v1865
        %v1874 = vsub.f32 %v1858, %v1866
        %v1875 = vsub.f32 %v1859, %v1867
        %v1876 = vsub.f32 %v1860, %v1868
        %v1877 = vmax.f32 %v1869, 0.0
        %v1878 = vmax.f32 %v1870, 0.0
        %v1879 = vmax.f32 %v1871, 0.0
        %v1880 = vmax.f32 %v1872, 0.0
        %v1881 = vmax.f32 %v1873, 0.0
        %v1882 = vmax.f32 %v1874, 0.0
        %v1883 = vmax.f32 %v1875, 0.0
        %v1884 = vmax.f32 %v1876, 0.0
        %v1885 = vsel %vm1108, %v1205, 0.0
        %1886 = vadd.xlane.f32.xlu0 %v1885
        %v1887 = vpop.xlane.xlu0 %1886
        %v1888 = vsel %vm1108, %v1206, 0.0
        %1889 = vadd.xlane.f32.xlu0 %v1888
        %v1890 = vpop.xlane.xlu0 %1889
        %v1891 = vsel %vm1108, %v1207, 0.0
        %1892 = vadd.xlane.f32.xlu0 %v1891
        %v1893 = vpop.xlane.xlu0 %1892
        %v1894 = vsel %vm1108, %v1208, 0.0
        %1895 = vadd.xlane.f32.xlu0 %v1894
        %v1896 = vpop.xlane.xlu0 %1895
        %v1897 = vsel %vm1108, %v1209, 0.0
        %1898 = vadd.xlane.f32.xlu0 %v1897
        %v1899 = vpop.xlane.xlu0 %1898
        %v1900 = vsel %vm1108, %v1210, 0.0
        %1901 = vadd.xlane.f32.xlu0 %v1900
        %v1902 = vpop.xlane.xlu0 %1901
        %v1903 = vsel %vm1108, %v1211, 0.0
        %1904 = vadd.xlane.f32.xlu0 %v1903
        %v1905 = vpop.xlane.xlu0 %1904
        %v1906 = vsel %vm1108, %v1212, 0.0
        %1907 = vadd.xlane.f32.xlu0 %v1906
        %v1908 = vpop.xlane.xlu0 %1907
        %v1909 = vrot.slane %v1887, 4
        %v1910 = vadd.f32 %v1887, %v1909
        %v1911 = vrot.slane %v1910, 2
        %v1912 = vadd.f32 %v1910, %v1911
        %v1913 = vrot.slane %v1912, 1
        %v1914 = vadd.f32 %v1912, %v1913
        %v1915 = vrot.slane %v1890, 4
        %v1916 = vadd.f32 %v1890, %v1915
        %v1917 = vrot.slane %v1916, 2
        %v1918 = vadd.f32 %v1916, %v1917
        %v1919 = vrot.slane %v1918, 1
        %v1920 = vadd.f32 %v1918, %v1919
        %v1921 = vrot.slane %v1893, 4
        %v1922 = vadd.f32 %v1893, %v1921
        %v1923 = vrot.slane %v1922, 2
        %v1924 = vadd.f32 %v1922, %v1923
        %v1925 = vrot.slane %v1924, 1
        %v1926 = vadd.f32 %v1924, %v1925
        %v1927 = vrot.slane %v1896, 4
        %v1928 = vadd.f32 %v1896, %v1927
        %v1929 = vrot.slane %v1928, 2
        %v1930 = vadd.f32 %v1928, %v1929
        %v1931 = vrot.slane %v1930, 1
        %v1932 = vadd.f32 %v1930, %v1931
        %v1933 = vrot.slane %v1899, 4
        %v1934 = vadd.f32 %v1899, %v1933
        %v1935 = vrot.slane %v1934, 2
        %v1936 = vadd.f32 %v1934, %v1935
        %v1937 = vrot.slane %v1936, 1
        %v1938 = vadd.f32 %v1936, %v1937
        %v1939 = vrot.slane %v1902, 4
        %v1940 = vadd.f32 %v1902, %v1939
        %v1941 = vrot.slane %v1940, 2
        %v1942 = vadd.f32 %v1940, %v1941
        %v1943 = vrot.slane %v1942, 1
        %v1944 = vadd.f32 %v1942, %v1943
        %v1945 = vrot.slane %v1905, 4
        %v1946 = vadd.f32 %v1905, %v1945
        %v1947 = vrot.slane %v1946, 2
        %v1948 = vadd.f32 %v1946, %v1947
        %v1949 = vrot.slane %v1948, 1
        %v1950 = vadd.f32 %v1948, %v1949
        %v1951 = vrot.slane %v1908, 4
        %v1952 = vadd.f32 %v1908, %v1951
        %v1953 = vrot.slane %v1952, 2
        %v1954 = vadd.f32 %v1952, %v1953
        %v1955 = vrot.slane %v1954, 1
        %v1956 = vadd.f32 %v1954, %v1955
        %v1957 = vsel %vm1108, %v1877, 0.0
        %1958 = vadd.xlane.f32.xlu0 %v1957
        %v1959 = vpop.xlane.xlu0 %1958
        %v1960 = vsel %vm1108, %v1878, 0.0
        %1961 = vadd.xlane.f32.xlu0 %v1960
        %v1962 = vpop.xlane.xlu0 %1961
        %v1963 = vsel %vm1108, %v1879, 0.0
        %1964 = vadd.xlane.f32.xlu0 %v1963
        %v1965 = vpop.xlane.xlu0 %1964
        %v1966 = vsel %vm1108, %v1880, 0.0
        %1967 = vadd.xlane.f32.xlu0 %v1966
        %v1968 = vpop.xlane.xlu0 %1967
        %v1969 = vsel %vm1108, %v1881, 0.0
        %1970 = vadd.xlane.f32.xlu0 %v1969
        %v1971 = vpop.xlane.xlu0 %1970
        %v1972 = vsel %vm1108, %v1882, 0.0
        %1973 = vadd.xlane.f32.xlu0 %v1972
        %v1974 = vpop.xlane.xlu0 %1973
        %v1975 = vsel %vm1108, %v1883, 0.0
        %1976 = vadd.xlane.f32.xlu0 %v1975
        %v1977 = vpop.xlane.xlu0 %1976
        %v1978 = vsel %vm1108, %v1884, 0.0
        %1979 = vadd.xlane.f32.xlu0 %v1978
        %v1980 = vpop.xlane.xlu0 %1979
        %v1981 = vrot.slane %v1959, 4
        %v1982 = vadd.f32 %v1959, %v1981
        %v1983 = vrot.slane %v1982, 2
        %v1984 = vadd.f32 %v1982, %v1983
        %v1985 = vrot.slane %v1984, 1
        %v1986 = vadd.f32 %v1984, %v1985
        %v1987 = vrot.slane %v1962, 4
        %v1988 = vadd.f32 %v1962, %v1987
        %v1989 = vrot.slane %v1988, 2
        %v1990 = vadd.f32 %v1988, %v1989
        %v1991 = vrot.slane %v1990, 1
        %v1992 = vadd.f32 %v1990, %v1991
        %v1993 = vrot.slane %v1965, 4
        %v1994 = vadd.f32 %v1965, %v1993
        %v1995 = vrot.slane %v1994, 2
        %v1996 = vadd.f32 %v1994, %v1995
        %v1997 = vrot.slane %v1996, 1
        %v1998 = vadd.f32 %v1996, %v1997
        %v1999 = vrot.slane %v1968, 4
        %v2000 = vadd.f32 %v1968, %v1999
        %v2001 = vrot.slane %v2000, 2
        %v2002 = vadd.f32 %v2000, %v2001
        %v2003 = vrot.slane %v2002, 1
        %v2004 = vadd.f32 %v2002, %v2003
        %v2005 = vrot.slane %v1971, 4
        %v2006 = vadd.f32 %v1971, %v2005
        %v2007 = vrot.slane %v2006, 2
        %v2008 = vadd.f32 %v2006, %v2007
        %v2009 = vrot.slane %v2008, 1
        %v2010 = vadd.f32 %v2008, %v2009
        %v2011 = vrot.slane %v1974, 4
        %v2012 = vadd.f32 %v1974, %v2011
        %v2013 = vrot.slane %v2012, 2
        %v2014 = vadd.f32 %v2012, %v2013
        %v2015 = vrot.slane %v2014, 1
        %v2016 = vadd.f32 %v2014, %v2015
        %v2017 = vrot.slane %v1977, 4
        %v2018 = vadd.f32 %v1977, %v2017
        %v2019 = vrot.slane %v2018, 2
        %v2020 = vadd.f32 %v2018, %v2019
        %v2021 = vrot.slane %v2020, 1
        %v2022 = vadd.f32 %v2020, %v2021
        %v2023 = vrot.slane %v1980, 4
        %v2024 = vadd.f32 %v1980, %v2023
        %v2025 = vrot.slane %v2024, 2
        %v2026 = vadd.f32 %v2024, %v2025
        %v2027 = vrot.slane %v2026, 1
        %v2028 = vadd.f32 %v2026, %v2027
        %v2029 = vrcp.pop %v1914
        %v2030 = vmul.f32 1.0, %v2029
        %v2031 = vrcp.pop %v1920
        %v2032 = vmul.f32 1.0, %v2031
        %v2033 = vrcp.pop %v1926
        %v2034 = vmul.f32 1.0, %v2033
        %v2035 = vrcp.pop %v1932
        %v2036 = vmul.f32 1.0, %v2035
        %v2037 = vrcp.pop %v1938
        %v2038 = vmul.f32 1.0, %v2037
        %v2039 = vrcp.pop %v1944
        %v2040 = vmul.f32 1.0, %v2039
        %v2041 = vrcp.pop %v1950
        %v2042 = vmul.f32 1.0, %v2041
        %v2043 = vrcp.pop %v1956
        %v2044 = vmul.f32 1.0, %v2043
        %v2045 = vmul.f32 %v1205, %v2030
        %v2046 = vmul.f32 %v1206, %v2032
        %v2047 = vmul.f32 %v1207, %v2034
        %v2048 = vmul.f32 %v1208, %v2036
        %v2049 = vmul.f32 %v1209, %v2038
        %v2050 = vmul.f32 %v1210, %v2040
        %v2051 = vmul.f32 %v1211, %v2042
        %v2052 = vmul.f32 %v1212, %v2044
        %v2053 = vrcp.pop %v1986
        %v2054 = vmul.f32 1.0, %v2053
        %v2055 = vrcp.pop %v1992
        %v2056 = vmul.f32 1.0, %v2055
        %v2057 = vrcp.pop %v1998
        %v2058 = vmul.f32 1.0, %v2057
        %v2059 = vrcp.pop %v2004
        %v2060 = vmul.f32 1.0, %v2059
        %v2061 = vrcp.pop %v2010
        %v2062 = vmul.f32 1.0, %v2061
        %v2063 = vrcp.pop %v2016
        %v2064 = vmul.f32 1.0, %v2063
        %v2065 = vrcp.pop %v2022
        %v2066 = vmul.f32 1.0, %v2065
        %v2067 = vrcp.pop %v2028
        %v2068 = vmul.f32 1.0, %v2067
        %v2069 = vmul.f32 %v1877, %v2054
        %v2070 = vmul.f32 %v1878, %v2056
        %v2071 = vmul.f32 %v1879, %v2058
        %v2072 = vmul.f32 %v1880, %v2060
        %v2073 = vmul.f32 %v1881, %v2062
        %v2074 = vmul.f32 %v1882, %v2064
        %v2075 = vmul.f32 %v1883, %v2066
        %v2076 = vmul.f32 %v1884, %v2068
        %v2077 = vsub.f32 %v2045, %v2069
        %v2078 = vsub.f32 %v2046, %v2070
        %v2079 = vsub.f32 %v2047, %v2071
        %v2080 = vsub.f32 %v2048, %v2072
        %v2081 = vsub.f32 %v2049, %v2073
        %v2082 = vsub.f32 %v2050, %v2074
        %v2083 = vsub.f32 %v2051, %v2075
        %v2084 = vsub.f32 %v2052, %v2076
        %v2085 = vmul.f32 %v2077, %v2077
        %v2086 = vmul.f32 %v2078, %v2078
        %v2087 = vmul.f32 %v2079, %v2079
        %v2088 = vmul.f32 %v2080, %v2080
        %v2089 = vmul.f32 %v2081, %v2081
        %v2090 = vmul.f32 %v2082, %v2082
        %v2091 = vmul.f32 %v2083, %v2083
        %v2092 = vmul.f32 %v2084, %v2084
        %v2093 = vsel %vm1108, %v2085, 0.0
        %2094 = vadd.xlane.f32.xlu0 %v2093
        %v2095 = vpop.xlane.xlu0 %2094
        %v2096 = vsel %vm1108, %v2086, 0.0
        %2097 = vadd.xlane.f32.xlu0 %v2096
        %v2098 = vpop.xlane.xlu0 %2097
        %v2099 = vsel %vm1108, %v2087, 0.0
        %2100 = vadd.xlane.f32.xlu0 %v2099
        %v2101 = vpop.xlane.xlu0 %2100
        %v2102 = vsel %vm1108, %v2088, 0.0
        %2103 = vadd.xlane.f32.xlu0 %v2102
        %v2104 = vpop.xlane.xlu0 %2103
        %v2105 = vsel %vm1108, %v2089, 0.0
        %2106 = vadd.xlane.f32.xlu0 %v2105
        %v2107 = vpop.xlane.xlu0 %2106
        %v2108 = vsel %vm1108, %v2090, 0.0
        %2109 = vadd.xlane.f32.xlu0 %v2108
        %v2110 = vpop.xlane.xlu0 %2109
        %v2111 = vsel %vm1108, %v2091, 0.0
        %2112 = vadd.xlane.f32.xlu0 %v2111
        %v2113 = vpop.xlane.xlu0 %2112
        %v2114 = vsel %vm1108, %v2092, 0.0
        %2115 = vadd.xlane.f32.xlu0 %v2114
        %v2116 = vpop.xlane.xlu0 %2115
        %v2117 = vrot.slane %v2095, 4
        %v2118 = vadd.f32 %v2095, %v2117
        %v2119 = vrot.slane %v2118, 2
        %v2120 = vadd.f32 %v2118, %v2119
        %v2121 = vrot.slane %v2120, 1
        %v2122 = vadd.f32 %v2120, %v2121
        %v2123 = vrot.slane %v2098, 4
        %v2124 = vadd.f32 %v2098, %v2123
        %v2125 = vrot.slane %v2124, 2
        %v2126 = vadd.f32 %v2124, %v2125
        %v2127 = vrot.slane %v2126, 1
        %v2128 = vadd.f32 %v2126, %v2127
        %v2129 = vrot.slane %v2101, 4
        %v2130 = vadd.f32 %v2101, %v2129
        %v2131 = vrot.slane %v2130, 2
        %v2132 = vadd.f32 %v2130, %v2131
        %v2133 = vrot.slane %v2132, 1
        %v2134 = vadd.f32 %v2132, %v2133
        %v2135 = vrot.slane %v2104, 4
        %v2136 = vadd.f32 %v2104, %v2135
        %v2137 = vrot.slane %v2136, 2
        %v2138 = vadd.f32 %v2136, %v2137
        %v2139 = vrot.slane %v2138, 1
        %v2140 = vadd.f32 %v2138, %v2139
        %v2141 = vrot.slane %v2107, 4
        %v2142 = vadd.f32 %v2107, %v2141
        %v2143 = vrot.slane %v2142, 2
        %v2144 = vadd.f32 %v2142, %v2143
        %v2145 = vrot.slane %v2144, 1
        %v2146 = vadd.f32 %v2144, %v2145
        %v2147 = vrot.slane %v2110, 4
        %v2148 = vadd.f32 %v2110, %v2147
        %v2149 = vrot.slane %v2148, 2
        %v2150 = vadd.f32 %v2148, %v2149
        %v2151 = vrot.slane %v2150, 1
        %v2152 = vadd.f32 %v2150, %v2151
        %v2153 = vrot.slane %v2113, 4
        %v2154 = vadd.f32 %v2113, %v2153
        %v2155 = vrot.slane %v2154, 2
        %v2156 = vadd.f32 %v2154, %v2155
        %v2157 = vrot.slane %v2156, 1
        %v2158 = vadd.f32 %v2156, %v2157
        %v2159 = vrot.slane %v2116, 4
        %v2160 = vadd.f32 %v2116, %v2159
        %v2161 = vrot.slane %v2160, 2
        %v2162 = vadd.f32 %v2160, %v2161
        %v2163 = vrot.slane %v2162, 1
        %v2164 = vadd.f32 %v2162, %v2163
        %v2165 = vrsqrt.pop %v2122
        %v2166 = vmul.f32 %v2122, %v2165
        %vm2167 = vcmp.eq.f32.partialorder %v2122, inf
        %v2168 = vsel %vm2167, %v2122, %v2166
        %vm2169 = vcmp.eq.f32.partialorder %v2122, 0.0
        %v2170 = vand.u32 %v2122, 2147483648
        %v2171 = vsel %vm2169, %v2170, %v2168
        %v2172 = vrsqrt.pop %v2128
        %v2173 = vmul.f32 %v2128, %v2172
        %vm2174 = vcmp.eq.f32.partialorder %v2128, inf
        %v2175 = vsel %vm2174, %v2128, %v2173
        %vm2176 = vcmp.eq.f32.partialorder %v2128, 0.0
        %v2177 = vand.u32 %v2128, 2147483648
        %v2178 = vsel %vm2176, %v2177, %v2175
        %v2179 = vrsqrt.pop %v2134
        %v2180 = vmul.f32 %v2134, %v2179
        %vm2181 = vcmp.eq.f32.partialorder %v2134, inf
        %v2182 = vsel %vm2181, %v2134, %v2180
        %vm2183 = vcmp.eq.f32.partialorder %v2134, 0.0
        %v2184 = vand.u32 %v2134, 2147483648
        %v2185 = vsel %vm2183, %v2184, %v2182
        %v2186 = vrsqrt.pop %v2140
        %v2187 = vmul.f32 %v2140, %v2186
        %vm2188 = vcmp.eq.f32.partialorder %v2140, inf
        %v2189 = vsel %vm2188, %v2140, %v2187
        %vm2190 = vcmp.eq.f32.partialorder %v2140, 0.0
        %v2191 = vand.u32 %v2140, 2147483648
        %v2192 = vsel %vm2190, %v2191, %v2189
        %v2193 = vrsqrt.pop %v2146
        %v2194 = vmul.f32 %v2146, %v2193
        %vm2195 = vcmp.eq.f32.partialorder %v2146, inf
        %v2196 = vsel %vm2195, %v2146, %v2194
        %vm2197 = vcmp.eq.f32.partialorder %v2146, 0.0
        %v2198 = vand.u32 %v2146, 2147483648
        %v2199 = vsel %vm2197, %v2198, %v2196
        %v2200 = vrsqrt.pop %v2152
        %v2201 = vmul.f32 %v2152, %v2200
        %vm2202 = vcmp.eq.f32.partialorder %v2152, inf
        %v2203 = vsel %vm2202, %v2152, %v2201
        %vm2204 = vcmp.eq.f32.partialorder %v2152, 0.0
        %v2205 = vand.u32 %v2152, 2147483648
        %v2206 = vsel %vm2204, %v2205, %v2203
        %v2207 = vrsqrt.pop %v2158
        %v2208 = vmul.f32 %v2158, %v2207
        %vm2209 = vcmp.eq.f32.partialorder %v2158, inf
        %v2210 = vsel %vm2209, %v2158, %v2208
        %vm2211 = vcmp.eq.f32.partialorder %v2158, 0.0
        %v2212 = vand.u32 %v2158, 2147483648
        %v2213 = vsel %vm2211, %v2212, %v2210
        %v2214 = vrsqrt.pop %v2164
        %v2215 = vmul.f32 %v2164, %v2214
        %vm2216 = vcmp.eq.f32.partialorder %v2164, inf
        %v2217 = vsel %vm2216, %v2164, %v2215
        %vm2218 = vcmp.eq.f32.partialorder %v2164, 0.0
        %v2219 = vand.u32 %v2164, 2147483648
        %v2220 = vsel %vm2218, %v2219, %v2217
        %v2221 = vmul.f32 %v2171, 64.0
        %v2222 = vmul.f32 %v2178, 64.0
        %v2223 = vmul.f32 %v2185, 64.0
        %v2224 = vmul.f32 %v2192, 64.0
        %v2225 = vmul.f32 %v2199, 64.0
        %v2226 = vmul.f32 %v2206, 64.0
        %v2227 = vmul.f32 %v2213, 64.0
        %v2228 = vmul.f32 %v2220, 64.0
        %vm2237 = vcmask 1041409
        %v2238 = vsel %vm2237, %v2222, %v2221
        %vm2239 = vcmask 1042434
        %v2240 = vsel %vm2239, %v2223, %v2238
        %vm2241 = vcmask 1043459
        %v2242 = vsel %vm2241, %v2224, %v2240
        %vm2243 = vcmask 1044484
        %v2244 = vsel %vm2243, %v2225, %v2242
        %vm2245 = vcmask 1045509
        %v2246 = vsel %vm2245, %v2226, %v2244
        %vm2247 = vcmask 1046534
        %v2248 = vsel %vm2247, %v2227, %v2246
        %vm2249 = vcmask 1047559
        %v2250 = vsel %vm2249, %v2228, %v2248
        %vm2252 = vcmask 7168
        %2253 = vst.msk [vmem:[%s201] sm:$0xff] %vm2252, %v2250
        %s2254 = sand.u32 %s76, 1
        %s2255 = scalar_lea.sflag [#allocation4], %s2254
        %s2256 = sand.u32 %s76, 1
        %s2257 = smul.addr %s2256, 64
        %s2258 = scalar_lea.vmem [#allocation5], %s2257
        %p2259 = scmp.lt.s32.totalorder %s21, 1
        %s2260 = scalar_select %p2259, %s21, 1
        %s2261 = smul.addr %s2260, 8
        %s2262 = scalar_lea.vmem %s3, %s2261
        // Predicated region
        $region33: #{last_embedding_forward_batched.1} parent=27 // pred_check
          %p2263 = pneg %p86
        $region34: #{last_embedding_forward_batched.1} parent=27 // pred_check_branch
          %2265 = sbr.rel (%p2263) target = $region36
        $region35: #{last_embedding_forward_batched.1} parent=27 // pred_region
          %s2266 = smul.u32 8, %s21
          %s2268 = ssub.s32 1024, 1024
          %2269 = vsyncadd %s2255, %s2268
          %s2270 = smul.addr %s2266, 128
          %s2271 = scalar_lea.hbm %s2, %s2270
          %s2272 = sshll.u32 %s2258, 4
          %s2273 = int_to_ptr.vmem [resolvable:$true] %s2272
          %2278 = dma.vmem_to_hbm [thread:$0]  %s2273, 1024, %s2271, %s2255, 128, 128, 8
        $region36: #{last_embedding_forward_batched.1} parent=27 // pred_fallthru
          _
        // Predicated region
        $region37: #{last_embedding_forward_batched.1} parent=27 // pred_check
          %p2279 = pneg %p112
        $region38: #{last_embedding_forward_batched.1} parent=27 // pred_check_branch
          %2281 = sbr.rel (%p2279) target = $region40
        $region39: #{last_embedding_forward_batched.1} parent=27 // pred_region
          _
        $region40: #{last_embedding_forward_batched.1} parent=27 // pred_fallthru
          _
      $region28: #{last_embedding_forward_batched.1} parent=5 // pred_fallthru
        _
      %p2282 = scmp.le.s32.totalorder 2, %s16
      // Predicated region
      $region41: #{last_embedding_forward_batched.1} parent=5 // pred_check
        %p2283 = pneg %p2282
      $region42: #{last_embedding_forward_batched.1} parent=5 // pred_check_branch
        %2285 = sbr.rel (%p2283) target = $region44
      $region43: #{last_embedding_forward_batched.1} parent=5 // pred_region
        %s2286 = ssub.s32 %s16, 2
        // Predicated region
        $region45: #{last_embedding_forward_batched.1} parent=43 // pred_check
          %p2287 = pneg %p92
        $region46: #{last_embedding_forward_batched.1} parent=43 // pred_check_branch
          %2289 = sbr.rel (%p2287) target = $region48
        $region47: #{last_embedding_forward_batched.1} parent=43 // pred_region
          %s2290 = sand.u32 %s77, 1
          %s2291 = scalar_lea.sflag [#allocation4], %s2290
          %s2292 = sand.u32 %s77, 1
          %s2293 = smul.addr %s2292, 64
          %s2294 = scalar_lea.vmem [#allocation5], %s2293
          %2295 = dma.done %s2291, 1024
        $region48: #{last_embedding_forward_batched.1} parent=43 // pred_fallthru
          _
        // Predicated region
        $region49: #{last_embedding_forward_batched.1} parent=43 // pred_check
          %p2296 = pneg %p118
        $region50: #{last_embedding_forward_batched.1} parent=43 // pred_check_branch
          %2298 = sbr.rel (%p2296) target = $region52
        $region51: #{last_embedding_forward_batched.1} parent=43 // pred_region
          %p2299 = scmp.lt.s32.totalorder %s22, 1
          %s2300 = scalar_select %p2299, %s22, 1
          %s2301 = smul.addr %s2300, 8
          %s2302 = scalar_lea.vmem %s3, %s2301
        $region52: #{last_embedding_forward_batched.1} parent=43 // pred_fallthru
          _
      $region44: #{last_embedding_forward_batched.1} parent=5 // pred_fallthru
        _
    $region6: #{last_embedding_forward_batched.1} parent=1 // loop_footer
      %s20 = sadd.s32 1, %s16
    $region7: #{last_embedding_forward_batched.1} parent=1 // loop_footer_branch
      %15 = sbr.rel target = $region3
    $region8: #{last_embedding_forward_batched.1} parent=1 // loop_exit
      _
    %2303 = vsyncpa [#allocation3], 1
    %s2304 = scalar_lea.sflag [#allocation3], 1
    %2305 = vsyncpa %s2304, 1
    %2306 = vsyncpa [#allocation4], 1
    %s2307 = scalar_lea.sflag [#allocation4], 1
    %2308 = vsyncpa %s2307, 1

</llo_original>
